<compile_context>
chip_gen: v5e
topology: v5e:2x2
jax: 0.10.0
libtpu: 0.0.40
codegen_flags: <defaults>
</compile_context>

<pallas_src>
import math

import jax
import jax.numpy as jnp
from jax import lax
from jax.experimental import pallas as pl
from jax.experimental.pallas import tpu as pltpu

LN_EPS = 1e-5


# --------------------------------------------------------------------------- utils
def _round_up(n, m):
    return (n + m - 1) // m * m


def _largest_aligned_divisor(n, cap, align):
    """Largest divisor of n that is <= cap and a multiple of `align` (else n)."""
    if n <= cap:
        return n
    for t in range(cap, 0, -1):
        if n % t == 0 and t % align == 0:
            return t
    return n


def _vmem_budget_bytes():
    """~75% of physical VMEM (48 MiB on v7x, 96 MiB on v5e/v6e); headroom for Mosaic."""
    try:
        cap = int(pltpu.get_tpu_info().vmem_capacity_bytes)
    except Exception:
        cap = 64 << 20
    return (cap * 3) // 4


def _clamp_vmem(est, budget):
    return int(min(max(2 * est, 32 << 20), budget))


# --------------------------------------------------------------------------- kernels
def _proj_ln_gelu_kernel(x_ref, pw_ref, g_ref, b_ref, h_ref, acc_ref):
    """h = GELU_exact(LayerNorm(x @ Wproj)); proj K-dim streamed on grid axis 1."""
    k = pl.program_id(1)

    @pl.when(k == 0)
    def _():
        acc_ref[...] = jnp.zeros_like(acc_ref)

    acc_ref[...] += jnp.dot(x_ref[...].astype(pw_ref.dtype), pw_ref[...],
                            preferred_element_type=jnp.float32)

    @pl.when(k == pl.num_programs(1) - 1)
    def _():
        h = acc_ref[...]
        mu = jnp.mean(h, axis=-1, keepdims=True)
        var = jnp.mean(jnp.square(h - mu), axis=-1, keepdims=True)
        h = (h - mu) * lax.rsqrt(var + LN_EPS)
        h = h * g_ref[...] + b_ref[...]
        # exact GELU (erf form, nn.GELU() default)
        h = 0.5 * h * (1.0 + lax.erf(h * (1.0 / math.sqrt(2.0))))
        h_ref[...] = h.astype(h_ref.dtype)


def _glu_mlp_kernel(h_ref, gu_ref, dw_ref, o_ref, acc_ref):
    """y = sum_c (silu(h @ Wg_c) * (h @ Wu_c)) @ Wd_c ; ctx streamed on grid axis 1."""
    c = pl.program_id(1)

    @pl.when(c == 0)
    def _():
        acc_ref[...] = jnp.zeros_like(acc_ref)

    tc = dw_ref.shape[0]
    # Fused [gate | up] matmul for this ctx block: one MXU pass, f32 accumulation.
    gu = jnp.dot(h_ref[...], gu_ref[...], preferred_element_type=jnp.float32)
    gate = gu[:, :tc]
    up = gu[:, tc:]
    inter = (gate * jax.nn.sigmoid(gate)) * up          # silu(gate) * up, in f32
    acc_ref[...] += jnp.dot(inter.astype(dw_ref.dtype), dw_ref[...],
                            preferred_element_type=jnp.float32)

    @pl.when(c == pl.num_programs(1) - 1)
    def _():
        o_ref[...] = acc_ref[...].astype(o_ref.dtype)


# --------------------------------------------------------------------------- packing
def pack_glm4v_patch_merger_weights(proj_w, ln_gamma, ln_beta, gate_w, up_w,
                                    down_w, *, tc=512, weight_dtype=jnp.bfloat16):
    """One-time weight packing (call once at load time, NOT per forward).

      proj_w : [dim, dim]   gate_w/up_w : [dim, ctx]   down_w : [ctx, dim]
    Returns (pw, gamma, beta, guw, dw) with
      guw : [nc, dim, 2*tc]  contiguous per-ctx-block [gate_c | up_c] slabs
      dw  : [nc, tc, dim]    contiguous per-ctx-block down slabs
    ctx is zero-padded to a multiple of tc; padded blocks yield silu(0)*0 = 0.
    """
    dim, ctx = gate_w.shape
    tc = min(tc, _round_up(ctx, 256))
    ctx_pad = _round_up(ctx, tc)
    pad = ctx_pad - ctx
    nc = ctx_pad // tc

    gw = jnp.pad(gate_w, ((0, 0), (0, pad))).astype(weight_dtype)
    uw = jnp.pad(up_w, ((0, 0), (0, pad))).astype(weight_dtype)
    dwp = jnp.pad(down_w, ((0, pad), (0, 0))).astype(weight_dtype)

    gw = gw.reshape(dim, nc, tc).transpose(1, 0, 2)          # [nc, dim, tc]
    uw = uw.reshape(dim, nc, tc).transpose(1, 0, 2)          # [nc, dim, tc]
    guw = jnp.concatenate([gw, uw], axis=2)                  # [nc, dim, 2*tc]
    dwp = dwp.reshape(nc, tc, dim)                           # [nc, tc, dim]

    pw = proj_w.astype(weight_dtype)
    gamma = ln_gamma.reshape(1, dim).astype(jnp.float32)
    beta = ln_beta.reshape(1, dim).astype(jnp.float32)
    return pw, gamma, beta, guw, dwp


# --------------------------------------------------------------------------- forward
def glm4v_patch_merger(hidden_state, packed_weights, *, tm=None):
    """hidden_state: [S, dim]; packed_weights from pack_glm4v_patch_merger_weights."""
    pw, gamma, beta, guw, dw = packed_weights
    S, dim = hidden_state.shape
    nc, tc, _ = dw.shape
    wdtype = pw.dtype
    w_bpe = jnp.dtype(wdtype).itemsize
    x_bpe = jnp.dtype(hidden_state.dtype).itemsize
    o_bpe = x_bpe

    budget = _vmem_budget_bytes()

    # --- sequence tiling (parallel grid axis) ---
    S_pad = _round_up(S, 8)
    if tm is None:
        tm = min(512, S_pad)
        # >= 2 parallel tiles whenever possible so both TensorCores get work.
        if S_pad // tm < 2 and S_pad >= 16:
            tm = _round_up(pl.cdiv(S_pad, 2), 8)
        # shrink tm until the stage-2 working set fits the VMEM budget
        while tm > 8:
            est2 = (2 * (tm * dim * w_bpe + dim * 2 * tc * w_bpe + tc * dim * w_bpe)
                    + 2 * tm * dim * o_bpe + tm * dim * 4)
            if est2 <= budget:
                break
            tm = _round_up(tm // 2, 8)
    S_pad = _round_up(S_pad, tm)
    n_seq = S_pad // tm

    x = hidden_state
    if S_pad != S:
        x = jnp.pad(x, ((0, S_pad - S), (0, 0)))

    # ---------------- stage 1: h = GELU(LayerNorm(x @ Wproj)) ----------------
    tk = _largest_aligned_divisor(dim, 2048, 256)
    nk = dim // tk
    vmem1 = _clamp_vmem(
        2 * (tm * tk * x_bpe + tk * dim * w_bpe)   # double-buffered x / proj-K blocks
        + 2 * tm * dim * w_bpe                     # double-buffered h output (bf16)
        + tm * dim * 4                             # f32 accumulator
        + 4 * dim * 4,                             # gamma / beta
        budget)
    h = pl.pallas_call(
        _proj_ln_gelu_kernel,
        out_shape=jax.ShapeDtypeStruct((S_pad, dim), wdtype),
        grid_spec=pltpu.PrefetchScalarGridSpec(
            num_scalar_prefetch=0,
            grid=(n_seq, nk),                                    # K (reduction) axis last
            in_specs=[
                pl.BlockSpec((tm, tk), lambda i, k: (i, k)),     # x tile
                pl.BlockSpec((tk, dim), lambda i, k: (k, 0)),    # proj weight K-block
                pl.BlockSpec((1, dim), lambda i, k: (0, 0)),     # LN gamma
                pl.BlockSpec((1, dim), lambda i, k: (0, 0)),     # LN beta
            ],
            out_specs=pl.BlockSpec((tm, dim), lambda i, k: (i, 0)),
            scratch_shapes=[pltpu.VMEM((tm, dim), jnp.float32)],
        ),
        compiler_params=pltpu.CompilerParams(
            dimension_semantics=("parallel", "arbitrary"),
            vmem_limit_bytes=vmem1),
    )(x, pw, gamma, beta)

    # -------- stage 2: y = sum_c silu(h @ Wg_c) * (h @ Wu_c) @ Wd_c ----------
    vmem2 = _clamp_vmem(
        2 * (tm * dim * w_bpe + dim * 2 * tc * w_bpe + tc * dim * w_bpe)
        + 2 * tm * dim * o_bpe
        + tm * dim * 4,
        budget)
    out = pl.pallas_call(
        _glu_mlp_kernel,
        out_shape=jax.ShapeDtypeStruct((S_pad, dim), hidden_state.dtype),
        grid_spec=pltpu.PrefetchScalarGridSpec(
            num_scalar_prefetch=0,
            grid=(n_seq, nc),                                          # ctx (reduction) last
            in_specs=[
                pl.BlockSpec((tm, dim), lambda i, c: (i, 0)),          # GELU(h) tile
                pl.BlockSpec((None, dim, 2 * tc), lambda i, c: (c, 0, 0)),  # [gate|up] slab
                pl.BlockSpec((None, tc, dim), lambda i, c: (c, 0, 0)),      # down slab
            ],
            out_specs=pl.BlockSpec((tm, dim), lambda i, c: (i, 0)),
            scratch_shapes=[pltpu.VMEM((tm, dim), jnp.float32)],
        ),
        compiler_params=pltpu.CompilerParams(
            dimension_semantics=("parallel", "arbitrary"),
            vmem_limit_bytes=vmem2),
    )(h, guw, dw)

    return out[:S] if S_pad != S else out


# --------------------------------------------------------------------------- reference
def _reference(hidden_state, proj_w, ln_gamma, ln_beta, gate_w, up_w, down_w):
    x = hidden_state.astype(jnp.float32)
    h = x @ proj_w.astype(jnp.float32)
    mu = jnp.mean(h, axis=-1, keepdims=True)
    var = jnp.mean(jnp.square(h - mu), axis=-1, keepdims=True)
    h = (h - mu) / jnp.sqrt(var + LN_EPS)
    h = h * ln_gamma.reshape(1, -1) + ln_beta.reshape(1, -1)
    h = 0.5 * h * (1.0 + lax.erf(h / jnp.sqrt(2.0)))
    gate = h @ gate_w.astype(jnp.float32)
    up = h @ up_w.astype(jnp.float32)
    return ((gate * jax.nn.sigmoid(gate)) * up) @ down_w.astype(jnp.float32)


if __name__ == "__main__":
    # Small shapes consistent with the module, chosen to exercise:
    #   * 2 sequence tiles on the parallel axis (S=160 -> tm=80),
    #   * 2 streamed ctx blocks (tc=256),
    #   * ctx zero-padding in the one-time weight pack (384 -> 512).
    S, DIM, CTX, TC = 160, 256, 384, 256

    key = jax.random.PRNGKey(0)
    ks = jax.random.split(key, 8)
    scale = 0.02
    hidden_state = jax.random.normal(ks[0], (S, DIM), jnp.float32)
    proj_w = scale * jax.random.normal(ks[1], (DIM, DIM), jnp.float32)
    ln_gamma = 1.0 + 0.1 * jax.random.normal(ks[2], (DIM,), jnp.float32)
    ln_beta = 0.1 * jax.random.normal(ks[3], (DIM,), jnp.float32)
    gate_w = scale * jax.random.normal(ks[4], (DIM, CTX), jnp.float32)
    up_w = scale * jax.random.normal(ks[5], (DIM, CTX), jnp.float32)
    down_w = scale * jax.random.normal(ks[6], (CTX, DIM), jnp.float32)

    # One-time weight packing (outside the forward path).
    packed = pack_glm4v_patch_merger_weights(
        proj_w, ln_gamma, ln_beta, gate_w, up_w, down_w, tc=TC)

    out = glm4v_patch_merger(hidden_state, packed)
    out = jax.block_until_ready(out)
    assert out.shape == (S, DIM)

    # Reference in f32 using the same bf16-rounded weights the kernel sees, so the
    # comparison isolates bf16 activation-operand rounding (accumulation is f32).
    q = lambda w: w.astype(jnp.bfloat16).astype(jnp.float32)
    ref = _reference(hidden_state, q(proj_w), ln_gamma, ln_beta,
                     q(gate_w), q(up_w), q(down_w))
    err = float(jnp.max(jnp.abs(out.astype(jnp.float32) - ref)))
    denom = float(jnp.max(jnp.abs(ref))) + 1e-6
    assert err / denom < 2.5e-2, f"mismatch vs reference: rel_err={err / denom:.3e}"

    print("KERNEL_OK")
</pallas_src>

<mosaic_0001>
module attributes {stable_mosaic.version = 11 : i64} {
  func.func @_proj_ln_gelu_kernel(%arg0: i32, %arg1: i32, %arg2: memref<80x256xf32, #tpu.memory_space<vmem>>, %arg3: memref<256x256xbf16, #tpu.memory_space<vmem>>, %arg4: memref<1x256xf32, #tpu.memory_space<vmem>>, %arg5: memref<1x256xf32, #tpu.memory_space<vmem>>, %arg6: memref<80x256xbf16, #tpu.memory_space<vmem>>, %arg7: memref<80x256xf32, #tpu.memory_space<vmem>>) attributes {dimension_semantics = [#tpu.dimension_semantics<parallel>, #tpu.dimension_semantics<arbitrary>], iteration_bounds = array<i64: 2, 1>, scalar_prefetch = 0 : i64, scratch_operands = 1 : i64, tpu.core_type = #tpu.core_type<tc>, window_params = [{transform_indices = @transform_0, window_bounds = array<i64: 80, 256>}, {transform_indices = @transform_1, window_bounds = array<i64: 256, 256>}, {pipeline_mode = #tpu.pipeline_mode<synchronous>, transform_indices = @transform_2, window_bounds = array<i64: 1, 256>}, {pipeline_mode = #tpu.pipeline_mode<synchronous>, transform_indices = @transform_3, window_bounds = array<i64: 1, 256>}, {transform_indices = @transform_4, window_bounds = array<i64: 80, 256>}]} {
    %c0_i32 = arith.constant 0 : i32
    %0 = arith.cmpi eq, %arg1, %c0_i32 : i32
    %1 = arith.extui %0 : i1 to i32
    %c0_i32_0 = arith.constant 0 : i32
    %2 = arith.cmpi ne, %1, %c0_i32_0 : i32
    scf.if %2 {
      %cst_10 = arith.constant 0.000000e+00 : f32
      %13 = vector.broadcast %cst_10 : f32 to vector<80x256xf32>
      %c0_11 = arith.constant 0 : index
      %c0_12 = arith.constant 0 : index
      %14 = vector.load %arg7[%c0_11, %c0_12] : memref<80x256xf32, #tpu.memory_space<vmem>>, vector<80x256xf32>
      tpu.vector_store %arg7[%c0_11, %c0_12], %13 {strides = array<i32>} : memref<80x256xf32, #tpu.memory_space<vmem>>, vector<80x256xf32>,
    } else {
    }
    %c0 = arith.constant 0 : index
    %c0_1 = arith.constant 0 : index
    %3 = vector.load %arg7[%c0, %c0_1] : memref<80x256xf32, #tpu.memory_space<vmem>>, vector<80x256xf32>
    %c0_2 = arith.constant 0 : index
    %c0_3 = arith.constant 0 : index
    %4 = vector.load %arg2[%c0_2, %c0_3] : memref<80x256xf32, #tpu.memory_space<vmem>>, vector<80x256xf32>
    %5 = arith.truncf %4 : vector<80x256xf32> to vector<80x256xbf16>
    %c0_4 = arith.constant 0 : index
    %c0_5 = arith.constant 0 : index
    %6 = vector.load %arg3[%c0_4, %c0_5] : memref<256x256xbf16, #tpu.memory_space<vmem>>, vector<256x256xbf16>
    %cst = arith.constant dense<0.000000e+00> : vector<80x256xf32>
    %7 = tpu.matmul %5, %6, %cst {dimension_numbers = #tpu.dot_dimension_numbers<[1], [0], [0], [1], [0, 0, 1, 1], [], []>} : vector<80x256xbf16>, vector<256x256xbf16>, vector<80x256xf32> -> vector<80x256xf32>
    %8 = arith.addf %3, %7 : vector<80x256xf32>
    %c0_6 = arith.constant 0 : index
    %c0_7 = arith.constant 0 : index
    %9 = vector.load %arg7[%c0_6, %c0_7] : memref<80x256xf32, #tpu.memory_space<vmem>>, vector<80x256xf32>
    tpu.vector_store %arg7[%c0_6, %c0_7], %8 {strides = array<i32>} : memref<80x256xf32, #tpu.memory_space<vmem>>, vector<80x256xf32>,
    %c0_i32_8 = arith.constant 0 : i32
    %10 = arith.cmpi eq, %arg1, %c0_i32_8 : i32
    %11 = arith.extui %10 : i1 to i32
    %c0_i32_9 = arith.constant 0 : i32
    %12 = arith.cmpi ne, %11, %c0_i32_9 : i32
    scf.if %12 {
      %c0_10 = arith.constant 0 : index
      %c0_11 = arith.constant 0 : index
      %13 = vector.load %arg7[%c0_10, %c0_11] : memref<80x256xf32, #tpu.memory_space<vmem>>, vector<80x256xf32>
      %cst_12 = arith.constant dense<0.000000e+00> : vector<80xf32>
      %14 = vector.multi_reduction <add>, %13, %cst_12 [1] : vector<80x256xf32> to vector<80xf32>
      %15 = vector.shape_cast %14 : vector<80xf32> to vector<80x1xf32>
      %cst_13 = arith.constant 2.560000e+02 : f32
      %16 = vector.broadcast %cst_13 : f32 to vector<80x1xf32>
      %17 = arith.divf %15, %16 : vector<80x1xf32>
      %18 = vector.broadcast %17 : vector<80x1xf32> to vector<80x256xf32>
      %19 = arith.subf %13, %18 : vector<80x256xf32>
      %20 = arith.mulf %19, %19 : vector<80x256xf32>
      %cst_14 = arith.constant dense<0.000000e+00> : vector<80xf32>
      %21 = vector.multi_reduction <add>, %20, %cst_14 [1] : vector<80x256xf32> to vector<80xf32>
      %22 = vector.shape_cast %21 : vector<80xf32> to vector<80x1xf32>
      %cst_15 = arith.constant 2.560000e+02 : f32
      %23 = vector.broadcast %cst_15 : f32 to vector<80x1xf32>
      %24 = arith.divf %22, %23 : vector<80x1xf32>
      %25 = vector.broadcast %17 : vector<80x1xf32> to vector<80x256xf32>
      %26 = arith.subf %13, %25 : vector<80x256xf32>
      %cst_16 = arith.constant 9.99999974E-6 : f32
      %27 = vector.broadcast %cst_16 : f32 to vector<80x1xf32>
      %28 = arith.addf %24, %27 : vector<80x1xf32>
      %29 = math.rsqrt %28 : vector<80x1xf32>
      %30 = vector.broadcast %29 : vector<80x1xf32> to vector<80x256xf32>
      %31 = arith.mulf %26, %30 : vector<80x256xf32>
      %c0_17 = arith.constant 0 : index
      %c0_18 = arith.constant 0 : index
      %32 = vector.load %arg4[%c0_17, %c0_18] : memref<1x256xf32, #tpu.memory_space<vmem>>, vector<1x256xf32>
      %33 = vector.broadcast %32 : vector<1x256xf32> to vector<80x256xf32>
      %34 = arith.mulf %31, %33 : vector<80x256xf32>
      %c0_19 = arith.constant 0 : index
      %c0_20 = arith.constant 0 : index
      %35 = vector.load %arg5[%c0_19, %c0_20] : memref<1x256xf32, #tpu.memory_space<vmem>>, vector<1x256xf32>
      %36 = vector.broadcast %35 : vector<1x256xf32> to vector<80x256xf32>
      %37 = arith.addf %34, %36 : vector<80x256xf32>
      %cst_21 = arith.constant 5.000000e-01 : f32
      %38 = vector.broadcast %cst_21 : f32 to vector<80x256xf32>
      %39 = arith.mulf %38, %37 : vector<80x256xf32>
      %cst_22 = arith.constant 0.707106769 : f32
      %40 = vector.broadcast %cst_22 : f32 to vector<80x256xf32>
      %41 = arith.mulf %37, %40 : vector<80x256xf32>
      %42 = math.erf %41 : vector<80x256xf32>
      %cst_23 = arith.constant 1.000000e+00 : f32
      %43 = vector.broadcast %cst_23 : f32 to vector<80x256xf32>
      %44 = arith.addf %43, %42 : vector<80x256xf32>
      %45 = arith.mulf %39, %44 : vector<80x256xf32>
      %46 = arith.truncf %45 : vector<80x256xf32> to vector<80x256xbf16>
      %c0_24 = arith.constant 0 : index
      %c0_25 = arith.constant 0 : index
      %47 = vector.load %arg6[%c0_24, %c0_25] : memref<80x256xbf16, #tpu.memory_space<vmem>>, vector<80x256xbf16>
      tpu.vector_store %arg6[%c0_24, %c0_25], %46 {strides = array<i32>} : memref<80x256xbf16, #tpu.memory_space<vmem>>, vector<80x256xbf16>,
    } else {
    }
    return
  }
  func.func @transform_0(%arg0: i32, %arg1: i32) -> (i32, i32) {
    %c0_i32 = arith.constant 0 : i32
    return %arg0, %arg1 : i32, i32
  }
  func.func @transform_1(%arg0: i32, %arg1: i32) -> (i32, i32) {
    %c0_i32 = arith.constant 0 : i32
    %c0_i32_0 = arith.constant 0 : i32
    return %arg1, %c0_i32 : i32, i32
  }
  func.func @transform_2(%arg0: i32, %arg1: i32) -> (i32, i32) {
    %c0_i32 = arith.constant 0 : i32
    %c0_i32_0 = arith.constant 0 : i32
    %c0_i32_1 = arith.constant 0 : i32
    return %c0_i32, %c0_i32_0 : i32, i32
  }
  func.func @transform_3(%arg0: i32, %arg1: i32) -> (i32, i32) {
    %c0_i32 = arith.constant 0 : i32
    %c0_i32_0 = arith.constant 0 : i32
    %c0_i32_1 = arith.constant 0 : i32
    return %c0_i32, %c0_i32_0 : i32, i32
  }
  func.func @transform_4(%arg0: i32, %arg1: i32) -> (i32, i32) {
    %c0_i32 = arith.constant 0 : i32
    %c0_i32_0 = arith.constant 0 : i32
    return %arg0, %c0_i32 : i32, i32
  }
}

</mosaic_0001>

<llo_original>
// kernel: tpu_custom_call.1
$region0: #{tpu_custom_call.1}
  #allocation0 [shape = 'u32[]', space=smem, size = 0x4, offset = 0x4, fixed_abs, tag = 'smem constant byte address 0x4 - core index']
  #allocation1 [shape = 'u32[72,128]{1,0:T(1,128)}', space=vmem, size = 0x9000, scoped, tag = 'internal scratch']
  #allocation2 [shape = 'f32[80,256]{1,0:T(8,128)}', space=vmem, size = 0x14000, scoped, tag = 'scratch operand']
  %s0 = inlined_call_operand.hbm [shape: f32[160,256], index: 0, kind: input, shape index: {}]
  %s1 = inlined_call_operand.hbm [shape: bf16[256,256], index: 1, kind: input, shape index: {}]
  %s2 = inlined_call_operand.hbm [shape: f32[1,256], index: 2, kind: input, shape index: {}]
  %s3 = inlined_call_operand.vmem [shape: f32[1,256], index: 3, kind: input, shape index: {}]
  %s4 = inlined_call_operand.hbm [shape: bf16[160,256], index: 4, kind: output, shape index: {}]
  %s5 = sld [smem:[#allocation0]]
  $region69: #{tpu_custom_call.1} parent=0
    _
  %s7 = ssub.s32 1, %s5
  %s8 = scalar_select 0, %s7, %s5
  $region1: #{tpu_custom_call.1} parent=0
    #allocation3 [shape = 'u8[163840]{0}', space=vmem, size = 0x28000, scoped, tag = 'input window, operand 0']
    #allocation4 [shape = 's32[2]{0}', space=sflag, size = 0x8, scoped, tag = 'scoped memory for tpu_custom_call.1']
    #allocation5 [shape = 's32[2]{0}', space=sflag, size = 0x8, scoped, tag = 'scoped memory for tpu_custom_call.1']
    #allocation6 [shape = 'u8[131072]{0}', space=vmem, size = 0x20000, scoped, tag = 'input window, operand 1, single buffered']
    #allocation7 [shape = 's32[1]{0}', space=sflag, size = 0x4, scoped, tag = 'scoped memory for tpu_custom_call.1']
    #allocation8 [shape = 'u8[1024]{0}', space=vmem, size = 0x400, scoped, tag = 'input window, operand 2, single buffered']
    #allocation9 [shape = 'u8[81920]{0}', space=vmem, size = 0x14000, scoped, tag = 'output window, operand 0']
    %9 = vsyncpa [#allocation4], 0
    %s10 = scalar_lea.sflag [#allocation4], 1
    %11 = vsyncpa %s10, 0
    %12 = vsyncpa [#allocation7], 0
    %13 = vsyncpa [#allocation5], 0
    %s14 = scalar_lea.sflag [#allocation5], 1
    %15 = vsyncpa %s14, 0
    loop: start=0, step=1, limit=4
    $region2: #{tpu_custom_call.1} parent=1 // loop_pre_header
      _
    $region3: #{tpu_custom_call.1} parent=1 // loop_header
      %s17 = sphi 0, %s21
      %p18 = scmp.ge.s32.totalorder %s17, 4
      %s24 = sphi 0, %s36
      %s25 = sphi 0, %s32
      %s26 = sphi 0, %s24
      %s27 = sphi 0, %s25
      %s28 = sphi 0, %s26
      %s29 = sphi 0, %s27
      %s41 = sphi 0, %s43
      %s44 = sphi 0, %s41
      %s45 = sphi 0, %s44
      %s61 = sphi 0, %s45
      %s67 = sphi 0, %s69
      %s70 = sphi 0, %s67
      %s71 = sphi 0, %s70
      %s87 = sphi 0, %s71
      %s91 = sphi 0, %s91
      %s93 = sphi 0, %s91
      %s94 = sphi 0, %s93
      %s108 = sphi 0, %s94
      %s112 = sphi 0, %s112
      %s114 = sphi 0, %s112
      %s115 = sphi 0, %s114
      %s129 = sphi 0, %s115
      %s135 = sphi 0, %s137
      %s138 = sphi 0, %s135
      %s139 = sphi 0, %s138
      %s155 = sphi 0, %s139
    $region4: #{tpu_custom_call.1} parent=1 // loop_header_branch
      %20 = sbr.rel (%p18) target = $region8
    $region5: #{tpu_custom_call.1} parent=1 // loop_body
      %s22 = ssub.s32 %s17, 1
      %s23 = ssub.s32 %s17, 2
      %s30 = sadd.s32 1, %s25
      %p31 = scmp.ge.s32.totalorder %s30, 1
      %s32 = scalar_select %p31, 0, %s30
      %s33 = sadd.s32 1, %s24
      %s34 = scalar_select %p31, %s33, %s24
      %p35 = scmp.ge.s32.totalorder %s34, 2
      %s36 = scalar_select %p35, 0, %s34
      %s37 = ssub.s32 %s24, %s36
      %s38 = ssub.s32 %s25, %s32
      %s39 = sor.u32 %s37, %s38
      %p40 = scmp.eq.s32.totalorder %s39, 0
      %s42 = sadd.s32 %s41, 1
      %s43 = scalar_select %p40, %s41, %s42
      %p46 = pneg %p40
      %p47 = scmp.eq.s32.totalorder %s17, 1
      %p48 = por %p46, %p47
      %p49 = scmp.ne.s32.totalorder %s41, %s44
      %p50 = scmp.eq.s32.totalorder %s17, 0
      %p51 = por %p49, %p50
      %p52 = scmp.ne.s32.totalorder %s41, %s44
      %p53 = scmp.eq.s32.totalorder %s22, 1
      %p54 = por %p52, %p53
      %p55 = scmp.ne.s32.totalorder %s44, %s45
      %p56 = scmp.eq.s32.totalorder %s22, 0
      %p57 = por %p55, %p56
      %p58 = scmp.ne.s32.totalorder %s44, %s45
      %p59 = scmp.eq.s32.totalorder %s23, 1
      %p60 = por %p58, %p59
      %p62 = scmp.ne.s32.totalorder %s45, %s61
      %p63 = scmp.eq.s32.totalorder %s23, 0
      %p64 = por %p62, %p63
      %s65 = ssub.s32 %s25, %s32
      %p66 = scmp.eq.s32.totalorder %s65, 0
      %s68 = sadd.s32 %s67, 1
      %s69 = scalar_select %p66, %s67, %s68
      %p72 = pneg %p66
      %p73 = scmp.eq.s32.totalorder %s17, 1
      %p74 = por %p72, %p73
      %p75 = scmp.ne.s32.totalorder %s67, %s70
      %p76 = scmp.eq.s32.totalorder %s17, 0
      %p77 = por %p75, %p76
      %p78 = scmp.ne.s32.totalorder %s67, %s70
      %p79 = scmp.eq.s32.totalorder %s22, 1
      %p80 = por %p78, %p79
      %p81 = scmp.ne.s32.totalorder %s70, %s71
      %p82 = scmp.eq.s32.totalorder %s22, 0
      %p83 = por %p81, %p82
      %p84 = scmp.ne.s32.totalorder %s70, %s71
      %p85 = scmp.eq.s32.totalorder %s23, 1
      %p86 = por %p84, %p85
      %p88 = scmp.ne.s32.totalorder %s71, %s87
      %p89 = scmp.eq.s32.totalorder %s23, 0
      %p90 = por %p88, %p89
      %s92 = sadd.s32 %s91, 1
      %p95 = scmp.eq.s32.totalorder %s17, 1
      %p96 = scmp.ne.s32.totalorder %s91, %s93
      %p97 = scmp.eq.s32.totalorder %s17, 0
      %p98 = por %p96, %p97
      %p99 = scmp.ne.s32.totalorder %s91, %s93
      %p100 = scmp.eq.s32.totalorder %s22, 1
      %p101 = por %p99, %p100
      %p102 = scmp.ne.s32.totalorder %s93, %s94
      %p103 = scmp.eq.s32.totalorder %s22, 0
      %p104 = por %p102, %p103
      %p105 = scmp.ne.s32.totalorder %s93, %s94
      %p106 = scmp.eq.s32.totalorder %s23, 1
      %p107 = por %p105, %p106
      %p109 = scmp.ne.s32.totalorder %s94, %s108
      %p110 = scmp.eq.s32.totalorder %s23, 0
      %p111 = por %p109, %p110
      %s113 = sadd.s32 %s112, 1
      %p116 = scmp.eq.s32.totalorder %s17, 1
      %p117 = scmp.ne.s32.totalorder %s112, %s114
      %p118 = scmp.eq.s32.totalorder %s17, 0
      %p119 = por %p117, %p118
      %p120 = scmp.ne.s32.totalorder %s112, %s114
      %p121 = scmp.eq.s32.totalorder %s22, 1
      %p122 = por %p120, %p121
      %p123 = scmp.ne.s32.totalorder %s114, %s115
      %p124 = scmp.eq.s32.totalorder %s22, 0
      %p125 = por %p123, %p124
      %p126 = scmp.ne.s32.totalorder %s114, %s115
      %p127 = scmp.eq.s32.totalorder %s23, 1
      %p128 = por %p126, %p127
      %p130 = scmp.ne.s32.totalorder %s115, %s129
      %p131 = scmp.eq.s32.totalorder %s23, 0
      %p132 = por %p130, %p131
      %s133 = ssub.s32 %s24, %s36
      %p134 = scmp.eq.s32.totalorder %s133, 0
      %s136 = sadd.s32 %s135, 1
      %s137 = scalar_select %p134, %s135, %s136
      %p140 = pneg %p134
      %p141 = scmp.eq.s32.totalorder %s17, 1
      %p142 = por %p140, %p141
      %p143 = scmp.ne.s32.totalorder %s135, %s138
      %p144 = scmp.eq.s32.totalorder %s17, 0
      %p145 = por %p143, %p144
      %p146 = scmp.ne.s32.totalorder %s135, %s138
      %p147 = scmp.eq.s32.totalorder %s22, 1
      %p148 = por %p146, %p147
      %p149 = scmp.ne.s32.totalorder %s138, %s139
      %p150 = scmp.eq.s32.totalorder %s22, 0
      %p151 = por %p149, %p150
      %p152 = scmp.ne.s32.totalorder %s138, %s139
      %p153 = scmp.eq.s32.totalorder %s23, 1
      %p154 = por %p152, %p153
      %p156 = scmp.ne.s32.totalorder %s139, %s155
      %p157 = scmp.eq.s32.totalorder %s23, 0
      %p158 = por %p156, %p157
      %p159 = scmp.le.s32.totalorder 1, %s17
      %p160 = scmp.lt.s32.totalorder %s17, 3
      %p161 = pnand %p159, %p160
      %p162 = pneg %p161
      // Predicated region
      $region9: #{tpu_custom_call.1} parent=5 // pred_check
        _
      $region10: #{tpu_custom_call.1} parent=5 // pred_check_branch
        %164 = sbr.rel (%p161) target = $region12
      $region11: #{tpu_custom_call.1} parent=5 // pred_region
        %s165 = ssub.s32 %s17, 1
        // Predicated region
        $region13: #{tpu_custom_call.1} parent=11 // pred_check
          %p166 = pneg %p83
        $region14: #{tpu_custom_call.1} parent=11 // pred_check_branch
          %168 = sbr.rel (%p166) target = $region16
        $region15: #{tpu_custom_call.1} parent=11 // pred_region
          %s169 = smul.u32 32, %s27
          %171 = vsyncadd [#allocation7], 0
          %s172 = smul.addr %s169, 2
          %s173 = smul.addr %s172, 4
          %s174 = scalar_lea.hbm %s1, %s173
          %s175 = sshll.u32 %s174, 4
          %s176 = int_to_ptr.hbm [resolvable:$true] %s175
          %s177 = sshll.u32 [#allocation6], 4
          %s178 = int_to_ptr.vmem [resolvable:$true] %s177
          %183 = dma.hbm_to_vmem [thread:$0]  %s176, 4096, %s178, [#allocation7], 128, 128, 8
        $region16: #{tpu_custom_call.1} parent=11 // pred_fallthru
          _
        // Predicated region
        $region17: #{tpu_custom_call.1} parent=11 // pred_check
          %p184 = pneg %p104
        $region18: #{tpu_custom_call.1} parent=11 // pred_check_branch
          %186 = sbr.rel (%p184) target = $region20
        $region19: #{tpu_custom_call.1} parent=11 // pred_region
          %188 = vsyncadd [#allocation7], 0
          %s190 = sshll.u32 %s2, 4
          %s191 = int_to_ptr.hbm [resolvable:$true] %s190
          %s192 = sshll.u32 [#allocation8], 4
          %s193 = int_to_ptr.vmem [resolvable:$true] %s192
          %195 = dma.hbm_to_vmem [thread:$0]  %s191, 32, %s193, [#allocation7]
        $region20: #{tpu_custom_call.1} parent=11 // pred_fallthru
          _
        // Predicated region
        $region21: #{tpu_custom_call.1} parent=11 // pred_check
          %p196 = pneg %p125
        $region22: #{tpu_custom_call.1} parent=11 // pred_check_branch
          %198 = sbr.rel (%p196) target = $region24
        $region23: #{tpu_custom_call.1} parent=11 // pred_region
          _
        $region24: #{tpu_custom_call.1} parent=11 // pred_fallthru
          _
      $region12: #{tpu_custom_call.1} parent=5 // pred_fallthru
        _
      %p199 = scmp.lt.s32.totalorder %s17, 2
      // Predicated region
      $region25: #{tpu_custom_call.1} parent=5 // pred_check
        %p200 = pneg %p199
      $region26: #{tpu_custom_call.1} parent=5 // pred_check_branch
        %202 = sbr.rel (%p200) target = $region28
      $region27: #{tpu_custom_call.1} parent=5 // pred_region
        // Predicated region
        $region29: #{tpu_custom_call.1} parent=27 // pred_check
          %p203 = pneg %p51
        $region30: #{tpu_custom_call.1} parent=27 // pred_check_branch
          %205 = sbr.rel (%p203) target = $region32
        $region31: #{tpu_custom_call.1} parent=27 // pred_region
          %s206 = sand.u32 %s41, 1
          %s207 = scalar_lea.sflag [#allocation4], %s206
          %s208 = sand.u32 %s41, 1
          %s209 = smul.addr %s208, 160
          %s210 = scalar_lea.vmem [#allocation3], %s209
          %s211 = smul.u32 10, %s24
          %s212 = smul.u32 2, %s25
          %214 = vsyncadd %s207, 0
          %s215 = smul.addr %s211, 2
          %s216 = sadd.s32 %s212, %s215
          %s217 = smul.addr %s216, 8
          %s218 = scalar_lea.hbm %s0, %s217
          %s219 = sshll.u32 %s218, 4
          %s220 = int_to_ptr.hbm [resolvable:$true] %s219
          %s221 = sshll.u32 %s210, 4
          %s222 = int_to_ptr.vmem [resolvable:$true] %s221
          %227 = dma.hbm_to_vmem [thread:$0]  %s220, 2560, %s222, %s207, 256, 256, 16
        $region32: #{tpu_custom_call.1} parent=27 // pred_fallthru
          _
      $region28: #{tpu_custom_call.1} parent=5 // pred_fallthru
        _
      %p228 = scmp.le.s32.totalorder 1, %s17
      %p229 = scmp.lt.s32.totalorder %s17, 3
      %p230 = pnand %p228, %p229
      %p231 = pneg %p230
      // Predicated region
      $region33: #{tpu_custom_call.1} parent=5 // pred_check
        _
      $region34: #{tpu_custom_call.1} parent=5 // pred_check_branch
        %233 = sbr.rel (%p230) target = $region36
      $region35: #{tpu_custom_call.1} parent=5 // pred_region
        %s234 = ssub.s32 %s17, 1
        %s235 = sand.u32 %s44, 1
        %s236 = scalar_lea.sflag [#allocation4], %s235
        %s237 = sand.u32 %s44, 1
        %s238 = smul.addr %s237, 160
        %s239 = scalar_lea.vmem [#allocation3], %s238
        // Predicated region
        $region37: #{tpu_custom_call.1} parent=35 // pred_check
          %p240 = pneg %p57
        $region38: #{tpu_custom_call.1} parent=35 // pred_check_branch
          %242 = sbr.rel (%p240) target = $region40
        $region39: #{tpu_custom_call.1} parent=35 // pred_region
          %244 = dma.done %s236, 2560
        $region40: #{tpu_custom_call.1} parent=35 // pred_fallthru
          _
        // Predicated region
        $region41: #{tpu_custom_call.1} parent=35 // pred_check
          %p245 = pneg %p83
        $region42: #{tpu_custom_call.1} parent=35 // pred_check_branch
          %247 = sbr.rel (%p245) target = $region44
        $region43: #{tpu_custom_call.1} parent=35 // pred_region
          %249 = dma.done [#allocation7], 4096
        $region44: #{tpu_custom_call.1} parent=35 // pred_fallthru
          _
        // Predicated region
        $region45: #{tpu_custom_call.1} parent=35 // pred_check
          %p250 = pneg %p104
        $region46: #{tpu_custom_call.1} parent=35 // pred_check_branch
          %252 = sbr.rel (%p250) target = $region48
        $region47: #{tpu_custom_call.1} parent=35 // pred_region
          %254 = dma.done [#allocation7], 32
        $region48: #{tpu_custom_call.1} parent=35 // pred_fallthru
          _
        %s255 = sand.u32 %s44, 1
        %s256 = scalar_lea.sflag [#allocation4], %s255
        %s257 = sand.u32 %s44, 1
        %s258 = smul.addr %s257, 160
        %s259 = scalar_lea.vmem [#allocation3], %s258
        %p260 = pneg %p57
        %p261 = pneg %p54
        %p262 = pneg %p83
        %p263 = pneg %p80
        %p264 = pneg %p104
        %p265 = pneg %p101
        %p266 = pneg %p125
        %p267 = pneg %p122
        %p268 = pneg %p151
        %p269 = pneg %p148
        %s270 = sand.u32 %s138, 1
        %s271 = scalar_lea.sflag [#allocation5], %s270
        %s272 = sand.u32 %s138, 1
        %s273 = smul.addr %s272, 80
        %s274 = scalar_lea.vmem [#allocation9], %s273
        %s275 = smul.u32 10, %s26
        %s276 = smul.u32 2, %s27
        %s277 = smul.u32 32, %s27
        %s278 = smul.u32 10, %s26
        %p279 = scmp.eq.s32.totalorder %s27, 0
        // Predicated region
        $region49: #{tpu_custom_call.1} parent=35 // pred_check
          %p280 = pneg %p279
        $region50: #{tpu_custom_call.1} parent=35 // pred_check_branch
          %282 = sbr.rel (%p280) target = $region52
        $region51: #{tpu_custom_call.1} parent=35 // pred_region
          %283 = vst [vmem:[#allocation2] sm:$0xff] 0.0
          %284 = vst [vmem:[#allocation2 + $0x8] sm:$0xff] 0.0
          %285 = vst [vmem:[#allocation2 + $0x10] sm:$0xff] 0.0
          %286 = vst [vmem:[#allocation2 + $0x18] sm:$0xff] 0.0
          %287 = vst [vmem:[#allocation2 + $0x20] sm:$0xff] 0.0
          %288 = vst [vmem:[#allocation2 + $0x28] sm:$0xff] 0.0
          %289 = vst [vmem:[#allocation2 + $0x30] sm:$0xff] 0.0
          %290 = vst [vmem:[#allocation2 + $0x38] sm:$0xff] 0.0
          %291 = vst [vmem:[#allocation2 + $0x40] sm:$0xff] 0.0
          %292 = vst [vmem:[#allocation2 + $0x48] sm:$0xff] 0.0
          %293 = vst [vmem:[#allocation2 + $0x50] sm:$0xff] 0.0
          %294 = vst [vmem:[#allocation2 + $0x58] sm:$0xff] 0.0
          %295 = vst [vmem:[#allocation2 + $0x60] sm:$0xff] 0.0
          %296 = vst [vmem:[#allocation2 + $0x68] sm:$0xff] 0.0
          %297 = vst [vmem:[#allocation2 + $0x70] sm:$0xff] 0.0
          %298 = vst [vmem:[#allocation2 + $0x78] sm:$0xff] 0.0
          %299 = vst [vmem:[#allocation2 + $0x80] sm:$0xff] 0.0
          %300 = vst [vmem:[#allocation2 + $0x88] sm:$0xff] 0.0
          %301 = vst [vmem:[#allocation2 + $0x90] sm:$0xff] 0.0
          %302 = vst [vmem:[#allocation2 + $0x98] sm:$0xff] 0.0
        $region52: #{tpu_custom_call.1} parent=35 // pred_fallthru
          _
        %v303 = vld [vmem:[#allocation2] sm:$0xff]
        %v304 = vld [vmem:[#allocation2 + $0x8] sm:$0xff]
        %v305 = vld [vmem:[#allocation2 + $0x10] sm:$0xff]
        %v306 = vld [vmem:[#allocation2 + $0x18] sm:$0xff]
        %v307 = vld [vmem:[#allocation2 + $0x20] sm:$0xff]
        %v308 = vld [vmem:[#allocation2 + $0x28] sm:$0xff]
        %v309 = vld [vmem:[#allocation2 + $0x30] sm:$0xff]
        %v310 = vld [vmem:[#allocation2 + $0x38] sm:$0xff]
        %v311 = vld [vmem:[#allocation2 + $0x40] sm:$0xff]
        %v312 = vld [vmem:[#allocation2 + $0x48] sm:$0xff]
        %v313 = vld [vmem:[#allocation2 + $0x50] sm:$0xff]
        %v314 = vld [vmem:[#allocation2 + $0x58] sm:$0xff]
        %v315 = vld [vmem:[#allocation2 + $0x60] sm:$0xff]
        %v316 = vld [vmem:[#allocation2 + $0x68] sm:$0xff]
        %v317 = vld [vmem:[#allocation2 + $0x70] sm:$0xff]
        %v318 = vld [vmem:[#allocation2 + $0x78] sm:$0xff]
        %v319 = vld [vmem:[#allocation2 + $0x80] sm:$0xff]
        %v320 = vld [vmem:[#allocation2 + $0x88] sm:$0xff]
        %v321 = vld [vmem:[#allocation2 + $0x90] sm:$0xff]
        %v322 = vld [vmem:[#allocation2 + $0x98] sm:$0xff]
        %v323 = vld [vmem:[%s239] sm:$0xff]
        %v324 = vld [vmem:[%s239 + $0x8] sm:$0xff]
        %v325 = vld [vmem:[%s239 + $0x10] sm:$0xff]
        %v326 = vld [vmem:[%s239 + $0x18] sm:$0xff]
        %v327 = vld [vmem:[%s239 + $0x20] sm:$0xff]
        %v328 = vld [vmem:[%s239 + $0x28] sm:$0xff]
        %v329 = vld [vmem:[%s239 + $0x30] sm:$0xff]
        %v330 = vld [vmem:[%s239 + $0x38] sm:$0xff]
        %v331 = vld [vmem:[%s239 + $0x40] sm:$0xff]
        %v332 = vld [vmem:[%s239 + $0x48] sm:$0xff]
        %v333 = vld [vmem:[%s239 + $0x50] sm:$0xff]
        %v334 = vld [vmem:[%s239 + $0x58] sm:$0xff]
        %v335 = vld [vmem:[%s239 + $0x60] sm:$0xff]
        %v336 = vld [vmem:[%s239 + $0x68] sm:$0xff]
        %v337 = vld [vmem:[%s239 + $0x70] sm:$0xff]
        %v338 = vld [vmem:[%s239 + $0x78] sm:$0xff]
        %v339 = vld [vmem:[%s239 + $0x80] sm:$0xff]
        %v340 = vld [vmem:[%s239 + $0x88] sm:$0xff]
        %v341 = vld [vmem:[%s239 + $0x90] sm:$0xff]
        %v342 = vld [vmem:[%s239 + $0x98] sm:$0xff]
        %v343 = vpack.c.bf16 %v325, %v323
        %v344 = vpack.c.bf16 %v326, %v324
        %v345 = vpack.c.bf16 %v329, %v327
        %v346 = vpack.c.bf16 %v330, %v328
        %v347 = vpack.c.bf16 %v333, %v331
        %v348 = vpack.c.bf16 %v334, %v332
        %v349 = vpack.c.bf16 %v337, %v335
        %v350 = vpack.c.bf16 %v338, %v336
        %v351 = vpack.c.bf16 %v341, %v339
        %v352 = vpack.c.bf16 %v342, %v340
        %v353 = vld [vmem:[#allocation6] sm:$0xff]
        %v354 = vld [vmem:[#allocation6 + $0x8] sm:$0xff]
        %v355 = vld [vmem:[#allocation6 + $0x10] sm:$0xff]
        %v356 = vld [vmem:[#allocation6 + $0x18] sm:$0xff]
        %v357 = vld [vmem:[#allocation6 + $0x20] sm:$0xff]
        %v358 = vld [vmem:[#allocation6 + $0x28] sm:$0xff]
        %v359 = vld [vmem:[#allocation6 + $0x30] sm:$0xff]
        %v360 = vld [vmem:[#allocation6 + $0x38] sm:$0xff]
        %v361 = vld [vmem:[#allocation6 + $0x40] sm:$0xff]
        %v362 = vld [vmem:[#allocation6 + $0x48] sm:$0xff]
        %v363 = vld [vmem:[#allocation6 + $0x50] sm:$0xff]
        %v364 = vld [vmem:[#allocation6 + $0x58] sm:$0xff]
        %v365 = vld [vmem:[#allocation6 + $0x60] sm:$0xff]
        %v366 = vld [vmem:[#allocation6 + $0x68] sm:$0xff]
        %v367 = vld [vmem:[#allocation6 + $0x70] sm:$0xff]
        %v368 = vld [vmem:[#allocation6 + $0x78] sm:$0xff]
        %v369 = vld [vmem:[#allocation6 + $0x80] sm:$0xff]
        %v370 = vld [vmem:[#allocation6 + $0x88] sm:$0xff]
        %v371 = vld [vmem:[#allocation6 + $0x90] sm:$0xff]
        %v372 = vld [vmem:[#allocation6 + $0x98] sm:$0xff]
        %v373 = vld [vmem:[#allocation6 + $0xa0] sm:$0xff]
        %v374 = vld [vmem:[#allocation6 + $0xa8] sm:$0xff]
        %v375 = vld [vmem:[#allocation6 + $0xb0] sm:$0xff]
        %v376 = vld [vmem:[#allocation6 + $0xb8] sm:$0xff]
        %v377 = vld [vmem:[#allocation6 + $0xc0] sm:$0xff]
        %v378 = vld [vmem:[#allocation6 + $0xc8] sm:$0xff]
        %v379 = vld [vmem:[#allocation6 + $0xd0] sm:$0xff]
        %v380 = vld [vmem:[#allocation6 + $0xd8] sm:$0xff]
        %v381 = vld [vmem:[#allocation6 + $0xe0] sm:$0xff]
        %v382 = vld [vmem:[#allocation6 + $0xe8] sm:$0xff]
        %v383 = vld [vmem:[#allocation6 + $0xf0] sm:$0xff]
        %v384 = vld [vmem:[#allocation6 + $0xf8] sm:$0xff]
        %v417 = vunpack.c.l.b16 %v353
        %v418 = vunpack.c.h.b16 %v353
        %v419 = vunpack.c.l.b16 %v354
        %v420 = vunpack.c.h.b16 %v354
        %v421 = vunpack.c.l.b16 %v355
        %v422 = vunpack.c.h.b16 %v355
        %v423 = vunpack.c.l.b16 %v356
        %v424 = vunpack.c.h.b16 %v356
        %v425 = vunpack.c.l.b16 %v357
        %v426 = vunpack.c.h.b16 %v357
        %v427 = vunpack.c.l.b16 %v358
        %v428 = vunpack.c.h.b16 %v358
        %v429 = vunpack.c.l.b16 %v359
        %v430 = vunpack.c.h.b16 %v359
        %v431 = vunpack.c.l.b16 %v360
        %v432 = vunpack.c.h.b16 %v360
        %v433 = vunpack.c.l.b16 %v361
        %v434 = vunpack.c.h.b16 %v361
        %v435 = vunpack.c.l.b16 %v362
        %v436 = vunpack.c.h.b16 %v362
        %v437 = vunpack.c.l.b16 %v363
        %v438 = vunpack.c.h.b16 %v363
        %v439 = vunpack.c.l.b16 %v364
        %v440 = vunpack.c.h.b16 %v364
        %v441 = vunpack.c.l.b16 %v365
        %v442 = vunpack.c.h.b16 %v365
        %v443 = vunpack.c.l.b16 %v366
        %v444 = vunpack.c.h.b16 %v366
        %v445 = vunpack.c.l.b16 %v367
        %v446 = vunpack.c.h.b16 %v367
        %v447 = vunpack.c.l.b16 %v368
        %v448 = vunpack.c.h.b16 %v368
        %v449 = vunpack.c.l.b16 %v369
        %v450 = vunpack.c.h.b16 %v369
        %v451 = vunpack.c.l.b16 %v370
        %v452 = vunpack.c.h.b16 %v370
        %v453 = vunpack.c.l.b16 %v371
        %v454 = vunpack.c.h.b16 %v371
        %v455 = vunpack.c.l.b16 %v372
        %v456 = vunpack.c.h.b16 %v372
        %v457 = vunpack.c.l.b16 %v373
        %v458 = vunpack.c.h.b16 %v373
        %v459 = vunpack.c.l.b16 %v374
        %v460 = vunpack.c.h.b16 %v374
        %v461 = vunpack.c.l.b16 %v375
        %v462 = vunpack.c.h.b16 %v375
        %v463 = vunpack.c.l.b16 %v376
        %v464 = vunpack.c.h.b16 %v376
        %v465 = vunpack.c.l.b16 %v377
        %v466 = vunpack.c.h.b16 %v377
        %v467 = vunpack.c.l.b16 %v378
        %v468 = vunpack.c.h.b16 %v378
        %v469 = vunpack.c.l.b16 %v379
        %v470 = vunpack.c.h.b16 %v379
        %v471 = vunpack.c.l.b16 %v380
        %v472 = vunpack.c.h.b16 %v380
        %v473 = vunpack.c.l.b16 %v381
        %v474 = vunpack.c.h.b16 %v381
        %v475 = vunpack.c.l.b16 %v382
        %v476 = vunpack.c.h.b16 %v382
        %v477 = vunpack.c.l.b16 %v383
        %v478 = vunpack.c.h.b16 %v383
        %v479 = vunpack.c.l.b16 %v384
        %v480 = vunpack.c.h.b16 %v384
        %v481 = vpack.c.b16 %v419, %v417
        %v482 = vpack.c.b16 %v420, %v418
        %v483 = vpack.c.b16 %v423, %v421
        %v484 = vpack.c.b16 %v424, %v422
        %v485 = vpack.c.b16 %v427, %v425
        %v486 = vpack.c.b16 %v428, %v426
        %v487 = vpack.c.b16 %v431, %v429
        %v488 = vpack.c.b16 %v432, %v430
        %v489 = vpack.c.b16 %v435, %v433
        %v490 = vpack.c.b16 %v436, %v434
        %v491 = vpack.c.b16 %v439, %v437
        %v492 = vpack.c.b16 %v440, %v438
        %v493 = vpack.c.b16 %v443, %v441
        %v494 = vpack.c.b16 %v444, %v442
        %v495 = vpack.c.b16 %v447, %v445
        %v496 = vpack.c.b16 %v448, %v446
        %v497 = vpack.c.b16 %v451, %v449
        %v498 = vpack.c.b16 %v452, %v450
        %v499 = vpack.c.b16 %v455, %v453
        %v500 = vpack.c.b16 %v456, %v454
        %v501 = vpack.c.b16 %v459, %v457
        %v502 = vpack.c.b16 %v460, %v458
        %v503 = vpack.c.b16 %v463, %v461
        %v504 = vpack.c.b16 %v464, %v462
        %v505 = vpack.c.b16 %v467, %v465
        %v506 = vpack.c.b16 %v468, %v466
        %v507 = vpack.c.b16 %v471, %v469
        %v508 = vpack.c.b16 %v472, %v470
        %v509 = vpack.c.b16 %v475, %v473
        %v510 = vpack.c.b16 %v476, %v474
        %v511 = vpack.c.b16 %v479, %v477
        %v512 = vpack.c.b16 %v480, %v478
        %545 = vmatpush.bf16.msra.mxu0 %v495
        %546 = vmatpush.bf16.msra.mxu0 %v493
        %547 = vmatpush.bf16.msra.mxu0 %v491
        %548 = vmatpush.bf16.msra.mxu0 %v489
        %549 = vmatpush.bf16.msra.mxu0 %v487
        %550 = vmatpush.bf16.msra.mxu0 %v485
        %551 = vmatpush.bf16.msra.mxu0 %v483
        %552 = vmatpush.bf16.msra.mxu0 %v481
        %553 = vmatmul.bf16.gmra.mxu0 %v343
        %v554 = vpop.f32.mrf.mxu0
        %v555 = vadd.f32 0.0, %v554
        %v556 = vpop.f32.mrf.mxu0
        %v557 = vadd.f32 0.0, %v556
        %558 = vmatmul.bf16.gmra.mxu0 %v345
        %v559 = vpop.f32.mrf.mxu0
        %v560 = vadd.f32 0.0, %v559
        %v561 = vpop.f32.mrf.mxu0
        %v562 = vadd.f32 0.0, %v561
        %563 = vmatmul.bf16.gmra.mxu0 %v347
        %v564 = vpop.f32.mrf.mxu0
        %v565 = vadd.f32 0.0, %v564
        %v566 = vpop.f32.mrf.mxu0
        %v567 = vadd.f32 0.0, %v566
        %568 = vmatmul.bf16.gmra.mxu0 %v349
        %v569 = vpop.f32.mrf.mxu0
        %v570 = vadd.f32 0.0, %v569
        %v571 = vpop.f32.mrf.mxu0
        %v572 = vadd.f32 0.0, %v571
        %573 = vmatmul.bf16.gmra.mxu0 %v351
        %v574 = vpop.f32.mrf.mxu0
        %v575 = vadd.f32 0.0, %v574
        %v576 = vpop.f32.mrf.mxu0
        %v577 = vadd.f32 0.0, %v576
        %578 = vdwg.mxu0
        %579 = vmatpush.bf16.msra.mxu0 %v511
        %580 = vmatpush.bf16.msra.mxu0 %v509
        %581 = vmatpush.bf16.msra.mxu0 %v507
        %582 = vmatpush.bf16.msra.mxu0 %v505
        %583 = vmatpush.bf16.msra.mxu0 %v503
        %584 = vmatpush.bf16.msra.mxu0 %v501
        %585 = vmatpush.bf16.msra.mxu0 %v499
        %586 = vmatpush.bf16.msra.mxu0 %v497
        %587 = vmatmul.bf16.gmra.mxu0 %v344
        %v588 = vpop.f32.mrf.mxu0
        %v589 = vadd.f32 %v555, %v588
        %v590 = vpop.f32.mrf.mxu0
        %v591 = vadd.f32 %v557, %v590
        %592 = vmatmul.bf16.gmra.mxu0 %v346
        %v593 = vpop.f32.mrf.mxu0
        %v594 = vadd.f32 %v560, %v593
        %v595 = vpop.f32.mrf.mxu0
        %v596 = vadd.f32 %v562, %v595
        %597 = vmatmul.bf16.gmra.mxu0 %v348
        %v598 = vpop.f32.mrf.mxu0
        %v599 = vadd.f32 %v565, %v598
        %v600 = vpop.f32.mrf.mxu0
        %v601 = vadd.f32 %v567, %v600
        %602 = vmatmul.bf16.gmra.mxu0 %v350
        %v603 = vpop.f32.mrf.mxu0
        %v604 = vadd.f32 %v570, %v603
        %v605 = vpop.f32.mrf.mxu0
        %v606 = vadd.f32 %v572, %v605
        %607 = vmatmul.bf16.gmra.mxu0 %v352
        %v608 = vpop.f32.mrf.mxu0
        %v609 = vadd.f32 %v575, %v608
        %v610 = vpop.f32.mrf.mxu0
        %v611 = vadd.f32 %v577, %v610
        %612 = vdwg.mxu0
        %613 = vmatpush.bf16.msra.mxu0 %v496
        %614 = vmatpush.bf16.msra.mxu0 %v494
        %615 = vmatpush.bf16.msra.mxu0 %v492
        %616 = vmatpush.bf16.msra.mxu0 %v490
        %617 = vmatpush.bf16.msra.mxu0 %v488
        %618 = vmatpush.bf16.msra.mxu0 %v486
        %619 = vmatpush.bf16.msra.mxu0 %v484
        %620 = vmatpush.bf16.msra.mxu0 %v482
        %621 = vmatmul.bf16.gmra.mxu0 %v343
        %v622 = vpop.f32.mrf.mxu0
        %v623 = vadd.f32 0.0, %v622
        %v624 = vpop.f32.mrf.mxu0
        %v625 = vadd.f32 0.0, %v624
        %626 = vmatmul.bf16.gmra.mxu0 %v345
        %v627 = vpop.f32.mrf.mxu0
        %v628 = vadd.f32 0.0, %v627
        %v629 = vpop.f32.mrf.mxu0
        %v630 = vadd.f32 0.0, %v629
        %631 = vmatmul.bf16.gmra.mxu0 %v347
        %v632 = vpop.f32.mrf.mxu0
        %v633 = vadd.f32 0.0, %v632
        %v634 = vpop.f32.mrf.mxu0
        %v635 = vadd.f32 0.0, %v634
        %636 = vmatmul.bf16.gmra.mxu0 %v349
        %v637 = vpop.f32.mrf.mxu0
        %v638 = vadd.f32 0.0, %v637
        %v639 = vpop.f32.mrf.mxu0
        %v640 = vadd.f32 0.0, %v639
        %641 = vmatmul.bf16.gmra.mxu0 %v351
        %v642 = vpop.f32.mrf.mxu0
        %v643 = vadd.f32 0.0, %v642
        %v644 = vpop.f32.mrf.mxu0
        %v645 = vadd.f32 0.0, %v644
        %646 = vdwg.mxu0
        %647 = vmatpush.bf16.msra.mxu0 %v512
        %648 = vmatpush.bf16.msra.mxu0 %v510
        %649 = vmatpush.bf16.msra.mxu0 %v508
        %650 = vmatpush.bf16.msra.mxu0 %v506
        %651 = vmatpush.bf16.msra.mxu0 %v504
        %652 = vmatpush.bf16.msra.mxu0 %v502
        %653 = vmatpush.bf16.msra.mxu0 %v500
        %654 = vmatpush.bf16.msra.mxu0 %v498
        %655 = vmatmul.bf16.gmra.mxu0 %v344
        %v656 = vpop.f32.mrf.mxu0
        %v657 = vadd.f32 %v623, %v656
        %v658 = vpop.f32.mrf.mxu0
        %v659 = vadd.f32 %v625, %v658
        %660 = vmatmul.bf16.gmra.mxu0 %v346
        %v661 = vpop.f32.mrf.mxu0
        %v662 = vadd.f32 %v628, %v661
        %v663 = vpop.f32.mrf.mxu0
        %v664 = vadd.f32 %v630, %v663
        %665 = vmatmul.bf16.gmra.mxu0 %v348
        %v666 = vpop.f32.mrf.mxu0
        %v667 = vadd.f32 %v633, %v666
        %v668 = vpop.f32.mrf.mxu0
        %v669 = vadd.f32 %v635, %v668
        %670 = vmatmul.bf16.gmra.mxu0 %v350
        %v671 = vpop.f32.mrf.mxu0
        %v672 = vadd.f32 %v638, %v671
        %v673 = vpop.f32.mrf.mxu0
        %v674 = vadd.f32 %v640, %v673
        %675 = vmatmul.bf16.gmra.mxu0 %v352
        %v676 = vpop.f32.mrf.mxu0
        %v677 = vadd.f32 %v643, %v676
        %v678 = vpop.f32.mrf.mxu0
        %v679 = vadd.f32 %v645, %v678
        %680 = vdwg.mxu0
        %v681 = vadd.f32 %v303, %v589
        %v682 = vadd.f32 %v304, %v657
        %v683 = vadd.f32 %v305, %v591
        %v684 = vadd.f32 %v306, %v659
        %v685 = vadd.f32 %v307, %v594
        %v686 = vadd.f32 %v308, %v662
        %v687 = vadd.f32 %v309, %v596
        %v688 = vadd.f32 %v310, %v664
        %v689 = vadd.f32 %v311, %v599
        %v690 = vadd.f32 %v312, %v667
        %v691 = vadd.f32 %v313, %v601
        %v692 = vadd.f32 %v314, %v669
        %v693 = vadd.f32 %v315, %v604
        %v694 = vadd.f32 %v316, %v672
        %v695 = vadd.f32 %v317, %v606
        %v696 = vadd.f32 %v318, %v674
        %v697 = vadd.f32 %v319, %v609
        %v698 = vadd.f32 %v320, %v677
        %v699 = vadd.f32 %v321, %v611
        %v700 = vadd.f32 %v322, %v679
        %701 = vst [vmem:[#allocation2] sm:$0xff] %v681
        %702 = vst [vmem:[#allocation2 + $0x8] sm:$0xff] %v682
        %703 = vst [vmem:[#allocation2 + $0x10] sm:$0xff] %v683
        %704 = vst [vmem:[#allocation2 + $0x18] sm:$0xff] %v684
        %705 = vst [vmem:[#allocation2 + $0x20] sm:$0xff] %v685
        %706 = vst [vmem:[#allocation2 + $0x28] sm:$0xff] %v686
        %707 = vst [vmem:[#allocation2 + $0x30] sm:$0xff] %v687
        %708 = vst [vmem:[#allocation2 + $0x38] sm:$0xff] %v688
        %709 = vst [vmem:[#allocation2 + $0x40] sm:$0xff] %v689
        %710 = vst [vmem:[#allocation2 + $0x48] sm:$0xff] %v690
        %711 = vst [vmem:[#allocation2 + $0x50] sm:$0xff] %v691
        %712 = vst [vmem:[#allocation2 + $0x58] sm:$0xff] %v692
        %713 = vst [vmem:[#allocation2 + $0x60] sm:$0xff] %v693
        %714 = vst [vmem:[#allocation2 + $0x68] sm:$0xff] %v694
        %715 = vst [vmem:[#allocation2 + $0x70] sm:$0xff] %v695
        %716 = vst [vmem:[#allocation2 + $0x78] sm:$0xff] %v696
        %717 = vst [vmem:[#allocation2 + $0x80] sm:$0xff] %v697
        %718 = vst [vmem:[#allocation2 + $0x88] sm:$0xff] %v698
        %719 = vst [vmem:[#allocation2 + $0x90] sm:$0xff] %v699
        %720 = vst [vmem:[#allocation2 + $0x98] sm:$0xff] %v700
        // Predicated region
        $region53: #{tpu_custom_call.1} parent=35 // pred_check
          %p721 = pneg %p279
        $region54: #{tpu_custom_call.1} parent=35 // pred_check_branch
          %723 = sbr.rel (%p721) target = $region56
        $region55: #{tpu_custom_call.1} parent=35 // pred_region
          %v724 = vld [vmem:[#allocation2] sm:$0xff]
          %v725 = vld [vmem:[#allocation2 + $0x8] sm:$0xff]
          %v726 = vld [vmem:[#allocation2 + $0x10] sm:$0xff]
          %v727 = vld [vmem:[#allocation2 + $0x18] sm:$0xff]
          %v728 = vld [vmem:[#allocation2 + $0x20] sm:$0xff]
          %v729 = vld [vmem:[#allocation2 + $0x28] sm:$0xff]
          %v730 = vld [vmem:[#allocation2 + $0x30] sm:$0xff]
          %v731 = vld [vmem:[#allocation2 + $0x38] sm:$0xff]
          %v732 = vld [vmem:[#allocation2 + $0x40] sm:$0xff]
          %v733 = vld [vmem:[#allocation2 + $0x48] sm:$0xff]
          %v734 = vld [vmem:[#allocation2 + $0x50] sm:$0xff]
          %v735 = vld [vmem:[#allocation2 + $0x58] sm:$0xff]
          %v736 = vld [vmem:[#allocation2 + $0x60] sm:$0xff]
          %v737 = vld [vmem:[#allocation2 + $0x68] sm:$0xff]
          %v738 = vld [vmem:[#allocation2 + $0x70] sm:$0xff]
          %v739 = vld [vmem:[#allocation2 + $0x78] sm:$0xff]
          %v740 = vld [vmem:[#allocation2 + $0x80] sm:$0xff]
          %v741 = vld [vmem:[#allocation2 + $0x88] sm:$0xff]
          %v742 = vld [vmem:[#allocation2 + $0x90] sm:$0xff]
          %v743 = vld [vmem:[#allocation2 + $0x98] sm:$0xff]
          %v744 = vadd.f32 %v724, %v725
          %745 = vadd.xlane.f32.xlu0 %v744
          %v746 = vpop.xlane.xlu0 %745
          %v747 = vadd.f32 %v726, %v727
          %748 = vadd.xlane.f32.xlu0 %v747
          %v749 = vpop.xlane.xlu0 %748
          %v750 = vadd.f32 %v728, %v729
          %751 = vadd.xlane.f32.xlu0 %v750
          %v752 = vpop.xlane.xlu0 %751
          %v753 = vadd.f32 %v730, %v731
          %754 = vadd.xlane.f32.xlu0 %v753
          %v755 = vpop.xlane.xlu0 %754
          %v756 = vadd.f32 %v732, %v733
          %757 = vadd.xlane.f32.xlu0 %v756
          %v758 = vpop.xlane.xlu0 %757
          %v759 = vadd.f32 %v734, %v735
          %760 = vadd.xlane.f32.xlu0 %v759
          %v761 = vpop.xlane.xlu0 %760
          %v762 = vadd.f32 %v736, %v737
          %763 = vadd.xlane.f32.xlu0 %v762
          %v764 = vpop.xlane.xlu0 %763
          %v765 = vadd.f32 %v738, %v739
          %766 = vadd.xlane.f32.xlu0 %v765
          %v767 = vpop.xlane.xlu0 %766
          %v768 = vadd.f32 %v740, %v741
          %769 = vadd.xlane.f32.xlu0 %v768
          %v770 = vpop.xlane.xlu0 %769
          %v771 = vadd.f32 %v742, %v743
          %772 = vadd.xlane.f32.xlu0 %v771
          %v773 = vpop.xlane.xlu0 %772
          %v774 = vrcp.pop 256.0
          %v775 = vmul.f32 256.0, %v774
          %v776 = vsub.f32 1.0, %v775
          %v777 = vmul.f32 %v774, %v776
          %v778 = vadd.f32 %v774, %v777
          %vm779 = vweird.f32 %v774
          %v780 = vsel %vm779, %v774, %v778
          %v781 = vmul.f32 %v746, %v780
          %v782 = vmul.f32 %v749, %v780
          %v783 = vmul.f32 %v752, %v780
          %v784 = vmul.f32 %v755, %v780
          %v785 = vmul.f32 %v758, %v780
          %v786 = vmul.f32 %v761, %v780
          %v787 = vmul.f32 %v764, %v780
          %v788 = vmul.f32 %v767, %v780
          %v789 = vmul.f32 %v770, %v780
          %v790 = vmul.f32 %v773, %v780
          %v791 = vsub.f32 %v724, %v781
          %v792 = vsub.f32 %v725, %v781
          %v793 = vsub.f32 %v726, %v782
          %v794 = vsub.f32 %v727, %v782
          %v795 = vsub.f32 %v728, %v783
          %v796 = vsub.f32 %v729, %v783
          %v797 = vsub.f32 %v730, %v784
          %v798 = vsub.f32 %v731, %v784
          %v799 = vsub.f32 %v732, %v785
          %v800 = vsub.f32 %v733, %v785
          %v801 = vsub.f32 %v734, %v786
          %v802 = vsub.f32 %v735, %v786
          %v803 = vsub.f32 %v736, %v787
          %v804 = vsub.f32 %v737, %v787
          %v805 = vsub.f32 %v738, %v788
          %v806 = vsub.f32 %v739, %v788
          %v807 = vsub.f32 %v740, %v789
          %v808 = vsub.f32 %v741, %v789
          %v809 = vsub.f32 %v742, %v790
          %v810 = vsub.f32 %v743, %v790
          %v811 = vmul.f32 %v791, %v791
          %v812 = vmul.f32 %v792, %v792
          %v813 = vmul.f32 %v793, %v793
          %v814 = vmul.f32 %v794, %v794
          %v815 = vmul.f32 %v795, %v795
          %v816 = vmul.f32 %v796, %v796
          %v817 = vmul.f32 %v797, %v797
          %v818 = vmul.f32 %v798, %v798
          %v819 = vmul.f32 %v799, %v799
          %v820 = vmul.f32 %v800, %v800
          %v821 = vmul.f32 %v801, %v801
          %v822 = vmul.f32 %v802, %v802
          %v823 = vmul.f32 %v803, %v803
          %v824 = vmul.f32 %v804, %v804
          %v825 = vmul.f32 %v805, %v805
          %v826 = vmul.f32 %v806, %v806
          %v827 = vmul.f32 %v807, %v807
          %v828 = vmul.f32 %v808, %v808
          %v829 = vmul.f32 %v809, %v809
          %v830 = vmul.f32 %v810, %v810
          %v831 = vadd.f32 %v811, %v812
          %832 = vadd.xlane.f32.xlu0 %v831
          %v833 = vpop.xlane.xlu0 %832
          %v834 = vadd.f32 %v813, %v814
          %835 = vadd.xlane.f32.xlu0 %v834
          %v836 = vpop.xlane.xlu0 %835
          %v837 = vadd.f32 %v815, %v816
          %838 = vadd.xlane.f32.xlu0 %v837
          %v839 = vpop.xlane.xlu0 %838
          %v840 = vadd.f32 %v817, %v818
          %841 = vadd.xlane.f32.xlu0 %v840
          %v842 = vpop.xlane.xlu0 %841
          %v843 = vadd.f32 %v819, %v820
          %844 = vadd.xlane.f32.xlu0 %v843
          %v845 = vpop.xlane.xlu0 %844
          %v846 = vadd.f32 %v821, %v822
          %847 = vadd.xlane.f32.xlu0 %v846
          %v848 = vpop.xlane.xlu0 %847
          %v849 = vadd.f32 %v823, %v824
          %850 = vadd.xlane.f32.xlu0 %v849
          %v851 = vpop.xlane.xlu0 %850
          %v852 = vadd.f32 %v825, %v826
          %853 = vadd.xlane.f32.xlu0 %v852
          %v854 = vpop.xlane.xlu0 %853
          %v855 = vadd.f32 %v827, %v828
          %856 = vadd.xlane.f32.xlu0 %v855
          %v857 = vpop.xlane.xlu0 %856
          %v858 = vadd.f32 %v829, %v830
          %859 = vadd.xlane.f32.xlu0 %v858
          %v860 = vpop.xlane.xlu0 %859
          %v861 = vmul.f32 %v833, %v780
          %v862 = vmul.f32 %v836, %v780
          %v863 = vmul.f32 %v839, %v780
          %v864 = vmul.f32 %v842, %v780
          %v865 = vmul.f32 %v845, %v780
          %v866 = vmul.f32 %v848, %v780
          %v867 = vmul.f32 %v851, %v780
          %v868 = vmul.f32 %v854, %v780
          %v869 = vmul.f32 %v857, %v780
          %v870 = vmul.f32 %v860, %v780
          %v871 = vadd.f32 %v861, 1e-05
          %v872 = vadd.f32 %v862, 1e-05
          %v873 = vadd.f32 %v863, 1e-05
          %v874 = vadd.f32 %v864, 1e-05
          %v875 = vadd.f32 %v865, 1e-05
          %v876 = vadd.f32 %v866, 1e-05
          %v877 = vadd.f32 %v867, 1e-05
          %v878 = vadd.f32 %v868, 1e-05
          %v879 = vadd.f32 %v869, 1e-05
          %v880 = vadd.f32 %v870, 1e-05
          %v881 = vrsqrt.pop %v871
          %v882 = vmul.f32 %v881, %v871
          %v883 = vmul.f32 %v882, %v881
          %v884 = vmul.f32 0.5, %v883
          %v885 = vsub.f32 1.5, %v884
          %v886 = vmul.f32 %v881, %v885
          %vm887 = vweird.f32 %v871
          %vm888 = vweird.f32 %v881
          %vm889 = vmor %vm887, %vm888
          %v890 = vsel %vm889, %v881, %v886
          %v891 = vrsqrt.pop %v872
          %v892 = vmul.f32 %v891, %v872
          %v893 = vmul.f32 %v892, %v891
          %v894 = vmul.f32 0.5, %v893
          %v895 = vsub.f32 1.5, %v894
          %v896 = vmul.f32 %v891, %v895
          %vm897 = vweird.f32 %v872
          %vm898 = vweird.f32 %v891
          %vm899 = vmor %vm897, %vm898
          %v900 = vsel %vm899, %v891, %v896
          %v901 = vrsqrt.pop %v873
          %v902 = vmul.f32 %v901, %v873
          %v903 = vmul.f32 %v902, %v901
          %v904 = vmul.f32 0.5, %v903
          %v905 = vsub.f32 1.5, %v904
          %v906 = vmul.f32 %v901, %v905
          %vm907 = vweird.f32 %v873
          %vm908 = vweird.f32 %v901
          %vm909 = vmor %vm907, %vm908
          %v910 = vsel %vm909, %v901, %v906
          %v911 = vrsqrt.pop %v874
          %v912 = vmul.f32 %v911, %v874
          %v913 = vmul.f32 %v912, %v911
          %v914 = vmul.f32 0.5, %v913
          %v915 = vsub.f32 1.5, %v914
          %v916 = vmul.f32 %v911, %v915
          %vm917 = vweird.f32 %v874
          %vm918 = vweird.f32 %v911
          %vm919 = vmor %vm917, %vm918
          %v920 = vsel %vm919, %v911, %v916
          %v921 = vrsqrt.pop %v875
          %v922 = vmul.f32 %v921, %v875
          %v923 = vmul.f32 %v922, %v921
          %v924 = vmul.f32 0.5, %v923
          %v925 = vsub.f32 1.5, %v924
          %v926 = vmul.f32 %v921, %v925
          %vm927 = vweird.f32 %v875
          %vm928 = vweird.f32 %v921
          %vm929 = vmor %vm927, %vm928
          %v930 = vsel %vm929, %v921, %v926
          %v931 = vrsqrt.pop %v876
          %v932 = vmul.f32 %v931, %v876
          %v933 = vmul.f32 %v932, %v931
          %v934 = vmul.f32 0.5, %v933
          %v935 = vsub.f32 1.5, %v934
          %v936 = vmul.f32 %v931, %v935
          %vm937 = vweird.f32 %v876
          %vm938 = vweird.f32 %v931
          %vm939 = vmor %vm937, %vm938
          %v940 = vsel %vm939, %v931, %v936
          %v941 = vrsqrt.pop %v877
          %v942 = vmul.f32 %v941, %v877
          %v943 = vmul.f32 %v942, %v941
          %v944 = vmul.f32 0.5, %v943
          %v945 = vsub.f32 1.5, %v944
          %v946 = vmul.f32 %v941, %v945
          %vm947 = vweird.f32 %v877
          %vm948 = vweird.f32 %v941
          %vm949 = vmor %vm947, %vm948
          %v950 = vsel %vm949, %v941, %v946
          %v951 = vrsqrt.pop %v878
          %v952 = vmul.f32 %v951, %v878
          %v953 = vmul.f32 %v952, %v951
          %v954 = vmul.f32 0.5, %v953
          %v955 = vsub.f32 1.5, %v954
          %v956 = vmul.f32 %v951, %v955
          %vm957 = vweird.f32 %v878
          %vm958 = vweird.f32 %v951
          %vm959 = vmor %vm957, %vm958
          %v960 = vsel %vm959, %v951, %v956
          %v961 = vrsqrt.pop %v879
          %v962 = vmul.f32 %v961, %v879
          %v963 = vmul.f32 %v962, %v961
          %v964 = vmul.f32 0.5, %v963
          %v965 = vsub.f32 1.5, %v964
          %v966 = vmul.f32 %v961, %v965
          %vm967 = vweird.f32 %v879
          %vm968 = vweird.f32 %v961
          %vm969 = vmor %vm967, %vm968
          %v970 = vsel %vm969, %v961, %v966
          %v971 = vrsqrt.pop %v880
          %v972 = vmul.f32 %v971, %v880
          %v973 = vmul.f32 %v972, %v971
          %v974 = vmul.f32 0.5, %v973
          %v975 = vsub.f32 1.5, %v974
          %v976 = vmul.f32 %v971, %v975
          %vm977 = vweird.f32 %v880
          %vm978 = vweird.f32 %v971
          %vm979 = vmor %vm977, %vm978
          %v980 = vsel %vm979, %v971, %v976
          %v981 = vmul.f32 %v791, %v890
          %v982 = vmul.f32 %v792, %v890
          %v983 = vmul.f32 %v793, %v900
          %v984 = vmul.f32 %v794, %v900
          %v985 = vmul.f32 %v795, %v910
          %v986 = vmul.f32 %v796, %v910
          %v987 = vmul.f32 %v797, %v920
          %v988 = vmul.f32 %v798, %v920
          %v989 = vmul.f32 %v799, %v930
          %v990 = vmul.f32 %v800, %v930
          %v991 = vmul.f32 %v801, %v940
          %v992 = vmul.f32 %v802, %v940
          %v993 = vmul.f32 %v803, %v950
          %v994 = vmul.f32 %v804, %v950
          %v995 = vmul.f32 %v805, %v960
          %v996 = vmul.f32 %v806, %v960
          %v997 = vmul.f32 %v807, %v970
          %v998 = vmul.f32 %v808, %v970
          %v999 = vmul.f32 %v809, %v980
          %v1000 = vmul.f32 %v810, %v980
          %v1001 = vld [vmem:[#allocation8] sm:$0x3]
          %v1003 = vperm.slane %v1001, 0
          %v1004 = vperm.slane %v1001, 1
          %v1007 = vmul.f32 %v981, %v1003
          %v1008 = vmul.f32 %v982, %v1004
          %v1009 = vmul.f32 %v983, %v1003
          %v1010 = vmul.f32 %v984, %v1004
          %v1011 = vmul.f32 %v985, %v1003
          %v1012 = vmul.f32 %v986, %v1004
          %v1013 = vmul.f32 %v987, %v1003
          %v1014 = vmul.f32 %v988, %v1004
          %v1015 = vmul.f32 %v989, %v1003
          %v1016 = vmul.f32 %v990, %v1004
          %v1017 = vmul.f32 %v991, %v1003
          %v1018 = vmul.f32 %v992, %v1004
          %v1019 = vmul.f32 %v993, %v1003
          %v1020 = vmul.f32 %v994, %v1004
          %v1021 = vmul.f32 %v995, %v1003
          %v1022 = vmul.f32 %v996, %v1004
          %v1023 = vmul.f32 %v997, %v1003
          %v1024 = vmul.f32 %v998, %v1004
          %v1025 = vmul.f32 %v999, %v1003
          %v1026 = vmul.f32 %v1000, %v1004
          %v1027 = vld [vmem:[%s3] sm:$0x3]
          %v1029 = vperm.slane %v1027, 0
          %v1030 = vperm.slane %v1027, 1
          %v1033 = vadd.f32 %v1007, %v1029
          %v1034 = vadd.f32 %v1008, %v1030
          %v1035 = vadd.f32 %v1009, %v1029
          %v1036 = vadd.f32 %v1010, %v1030
          %v1037 = vadd.f32 %v1011, %v1029
          %v1038 = vadd.f32 %v1012, %v1030
          %v1039 = vadd.f32 %v1013, %v1029
          %v1040 = vadd.f32 %v1014, %v1030
          %v1041 = vadd.f32 %v1015, %v1029
          %v1042 = vadd.f32 %v1016, %v1030
          %v1043 = vadd.f32 %v1017, %v1029
          %v1044 = vadd.f32 %v1018, %v1030
          %v1045 = vadd.f32 %v1019, %v1029
          %v1046 = vadd.f32 %v1020, %v1030
          %v1047 = vadd.f32 %v1021, %v1029
          %v1048 = vadd.f32 %v1022, %v1030
          %v1049 = vadd.f32 %v1023, %v1029
          %v1050 = vadd.f32 %v1024, %v1030
          %v1051 = vadd.f32 %v1025, %v1029
          %v1052 = vadd.f32 %v1026, %v1030
          %v1053 = vmul.f32 %v1033, 0.5
          %v1054 = vmul.f32 %v1034, 0.5
          %v1055 = vmul.f32 %v1035, 0.5
          %v1056 = vmul.f32 %v1036, 0.5
          %v1057 = vmul.f32 %v1037, 0.5
          %v1058 = vmul.f32 %v1038, 0.5
          %v1059 = vmul.f32 %v1039, 0.5
          %v1060 = vmul.f32 %v1040, 0.5
          %v1061 = vmul.f32 %v1041, 0.5
          %v1062 = vmul.f32 %v1042, 0.5
          %v1063 = vmul.f32 %v1043, 0.5
          %v1064 = vmul.f32 %v1044, 0.5
          %v1065 = vmul.f32 %v1045, 0.5
          %v1066 = vmul.f32 %v1046, 0.5
          %v1067 = vmul.f32 %v1047, 0.5
          %v1068 = vmul.f32 %v1048, 0.5
          %v1069 = vmul.f32 %v1049, 0.5
          %v1070 = vmul.f32 %v1050, 0.5
          %v1071 = vmul.f32 %v1051, 0.5
          %v1072 = vmul.f32 %v1052, 0.5
          %v1073 = vmul.f32 %v1033, 0.70710677
          %v1074 = vmul.f32 %v1034, 0.70710677
          %v1075 = vmul.f32 %v1035, 0.70710677
          %v1076 = vmul.f32 %v1036, 0.70710677
          %v1077 = vmul.f32 %v1037, 0.70710677
          %v1078 = vmul.f32 %v1038, 0.70710677
          %v1079 = vmul.f32 %v1039, 0.70710677
          %v1080 = vmul.f32 %v1040, 0.70710677
          %v1081 = vmul.f32 %v1041, 0.70710677
          %v1082 = vmul.f32 %v1042, 0.70710677
          %v1083 = vmul.f32 %v1043, 0.70710677
          %v1084 = vmul.f32 %v1044, 0.70710677
          %v1085 = vmul.f32 %v1045, 0.70710677
          %v1086 = vmul.f32 %v1046, 0.70710677
          %v1087 = vmul.f32 %v1047, 0.70710677
          %v1088 = vmul.f32 %v1048, 0.70710677
          %v1089 = vmul.f32 %v1049, 0.70710677
          %v1090 = vmul.f32 %v1050, 0.70710677
          %v1091 = vmul.f32 %v1051, 0.70710677
          %v1092 = vmul.f32 %v1052, 0.70710677
          %v1093 = vmul.f32 %v1073, %v1073
          %v1094 = vmin.f32 16.0, %v1093
          %v1095 = vmul.f32 %v1094, 2.1237322e-06
          %v1096 = vadd.f32 %v1095, 0.00028619796
          %v1097 = vmul.f32 %v1094, %v1096
          %v1098 = vadd.f32 %v1097, 0.0036580483
          %v1099 = vmul.f32 %v1094, %v1098
          %v1100 = vadd.f32 %v1099, 0.05243302
          %v1101 = vmul.f32 %v1094, %v1100
          %v1102 = vadd.f32 %v1101, 0.18741608
          %v1103 = vmul.f32 %v1094, %v1102
          %v1104 = vadd.f32 %v1103, 1.1283791
          %v1105 = vmul.f32 %v1073, %v1104
          %v1106 = vmul.f32 %v1094, 3.8918573e-05
          %v1107 = vadd.f32 %v1106, 0.001143296
          %v1108 = vmul.f32 %v1094, %v1107
          %v1109 = vadd.f32 %v1108, 0.014752088
          %v1110 = vmul.f32 %v1094, %v1109
          %v1111 = vadd.f32 %v1110, 0.112945676
          %v1112 = vmul.f32 %v1094, %v1111
          %v1113 = vadd.f32 %v1112, 0.4994258
          %v1114 = vmul.f32 %v1094, %v1113
          %v1115 = vadd.f32 %v1114, 1.0
          %v1116 = vrcp.pop %v1115
          %v1117 = vmul.f32 %v1115, %v1116
          %v1118 = vsub.f32 1.0, %v1117
          %v1119 = vmul.f32 %v1116, %v1118
          %v1120 = vadd.f32 %v1116, %v1119
          %vm1121 = vweird.f32 %v1115
          %vm1122 = vweird.f32 %v1116
          %vm1123 = vmor %vm1121, %vm1122
          %v1124 = vsel %vm1123, %v1116, %v1120
          %v1125 = vand.u32 2147483647, %v1115
          %vm1126 = vcmp.eq.f32.partialorder %v1125, 8.507059e+37
          %v1127 = vand.u32 %v1115, 2147483648
          %v1128 = vor.u32 1.1754944e-38, %v1127
          %v1129 = vsel %vm1126, %v1128, %v1124
          %v1130 = vmul.f32 %v1105, %v1129
          %v1131 = vmin.f32 %v1130, 1.0
          %v1132 = vmax.f32 %v1131, -1.0
          %v1133 = vmul.f32 %v1074, %v1074
          %v1134 = vmin.f32 16.0, %v1133
          %v1135 = vmul.f32 %v1134, 2.1237322e-06
          %v1136 = vadd.f32 %v1135, 0.00028619796
          %v1137 = vmul.f32 %v1134, %v1136
          %v1138 = vadd.f32 %v1137, 0.0036580483
          %v1139 = vmul.f32 %v1134, %v1138
          %v1140 = vadd.f32 %v1139, 0.05243302
          %v1141 = vmul.f32 %v1134, %v1140
          %v1142 = vadd.f32 %v1141, 0.18741608
          %v1143 = vmul.f32 %v1134, %v1142
          %v1144 = vadd.f32 %v1143, 1.1283791
          %v1145 = vmul.f32 %v1074, %v1144
          %v1146 = vmul.f32 %v1134, 3.8918573e-05
          %v1147 = vadd.f32 %v1146, 0.001143296
          %v1148 = vmul.f32 %v1134, %v1147
          %v1149 = vadd.f32 %v1148, 0.014752088
          %v1150 = vmul.f32 %v1134, %v1149
          %v1151 = vadd.f32 %v1150, 0.112945676
          %v1152 = vmul.f32 %v1134, %v1151
          %v1153 = vadd.f32 %v1152, 0.4994258
          %v1154 = vmul.f32 %v1134, %v1153
          %v1155 = vadd.f32 %v1154, 1.0
          %v1156 = vrcp.pop %v1155
          %v1157 = vmul.f32 %v1155, %v1156
          %v1158 = vsub.f32 1.0, %v1157
          %v1159 = vmul.f32 %v1156, %v1158
          %v1160 = vadd.f32 %v1156, %v1159
          %vm1161 = vweird.f32 %v1155
          %vm1162 = vweird.f32 %v1156
          %vm1163 = vmor %vm1161, %vm1162
          %v1164 = vsel %vm1163, %v1156, %v1160
          %v1165 = vand.u32 2147483647, %v1155
          %vm1166 = vcmp.eq.f32.partialorder %v1165, 8.507059e+37
          %v1167 = vand.u32 %v1155, 2147483648
          %v1168 = vor.u32 1.1754944e-38, %v1167
          %v1169 = vsel %vm1166, %v1168, %v1164
          %v1170 = vmul.f32 %v1145, %v1169
          %v1171 = vmin.f32 %v1170, 1.0
          %v1172 = vmax.f32 %v1171, -1.0
          %v1173 = vmul.f32 %v1075, %v1075
          %v1174 = vmin.f32 16.0, %v1173
          %v1175 = vmul.f32 %v1174, 2.1237322e-06
          %v1176 = vadd.f32 %v1175, 0.00028619796
          %v1177 = vmul.f32 %v1174, %v1176
          %v1178 = vadd.f32 %v1177, 0.0036580483
          %v1179 = vmul.f32 %v1174, %v1178
          %v1180 = vadd.f32 %v1179, 0.05243302
          %v1181 = vmul.f32 %v1174, %v1180
          %v1182 = vadd.f32 %v1181, 0.18741608
          %v1183 = vmul.f32 %v1174, %v1182
          %v1184 = vadd.f32 %v1183, 1.1283791
          %v1185 = vmul.f32 %v1075, %v1184
          %v1186 = vmul.f32 %v1174, 3.8918573e-05
          %v1187 = vadd.f32 %v1186, 0.001143296
          %v1188 = vmul.f32 %v1174, %v1187
          %v1189 = vadd.f32 %v1188, 0.014752088
          %v1190 = vmul.f32 %v1174, %v1189
          %v1191 = vadd.f32 %v1190, 0.112945676
          %v1192 = vmul.f32 %v1174, %v1191
          %v1193 = vadd.f32 %v1192, 0.4994258
          %v1194 = vmul.f32 %v1174, %v1193
          %v1195 = vadd.f32 %v1194, 1.0
          %v1196 = vrcp.pop %v1195
          %v1197 = vmul.f32 %v1195, %v1196
          %v1198 = vsub.f32 1.0, %v1197
          %v1199 = vmul.f32 %v1196, %v1198
          %v1200 = vadd.f32 %v1196, %v1199
          %vm1201 = vweird.f32 %v1195
          %vm1202 = vweird.f32 %v1196
          %vm1203 = vmor %vm1201, %vm1202
          %v1204 = vsel %vm1203, %v1196, %v1200
          %v1205 = vand.u32 2147483647, %v1195
          %vm1206 = vcmp.eq.f32.partialorder %v1205, 8.507059e+37
          %v1207 = vand.u32 %v1195, 2147483648
          %v1208 = vor.u32 1.1754944e-38, %v1207
          %v1209 = vsel %vm1206, %v1208, %v1204
          %v1210 = vmul.f32 %v1185, %v1209
          %v1211 = vmin.f32 %v1210, 1.0
          %v1212 = vmax.f32 %v1211, -1.0
          %v1213 = vmul.f32 %v1076, %v1076
          %v1214 = vmin.f32 16.0, %v1213
          %v1215 = vmul.f32 %v1214, 2.1237322e-06
          %v1216 = vadd.f32 %v1215, 0.00028619796
          %v1217 = vmul.f32 %v1214, %v1216
          %v1218 = vadd.f32 %v1217, 0.0036580483
          %v1219 = vmul.f32 %v1214, %v1218
          %v1220 = vadd.f32 %v1219, 0.05243302
          %v1221 = vmul.f32 %v1214, %v1220
          %v1222 = vadd.f32 %v1221, 0.18741608
          %v1223 = vmul.f32 %v1214, %v1222
          %v1224 = vadd.f32 %v1223, 1.1283791
          %v1225 = vmul.f32 %v1076, %v1224
          %v1226 = vmul.f32 %v1214, 3.8918573e-05
          %v1227 = vadd.f32 %v1226, 0.001143296
          %v1228 = vmul.f32 %v1214, %v1227
          %v1229 = vadd.f32 %v1228, 0.014752088
          %v1230 = vmul.f32 %v1214, %v1229
          %v1231 = vadd.f32 %v1230, 0.112945676
          %v1232 = vmul.f32 %v1214, %v1231
          %v1233 = vadd.f32 %v1232, 0.4994258
          %v1234 = vmul.f32 %v1214, %v1233
          %v1235 = vadd.f32 %v1234, 1.0
          %v1236 = vrcp.pop %v1235
          %v1237 = vmul.f32 %v1235, %v1236
          %v1238 = vsub.f32 1.0, %v1237
          %v1239 = vmul.f32 %v1236, %v1238
          %v1240 = vadd.f32 %v1236, %v1239
          %vm1241 = vweird.f32 %v1235
          %vm1242 = vweird.f32 %v1236
          %vm1243 = vmor %vm1241, %vm1242
          %v1244 = vsel %vm1243, %v1236, %v1240
          %v1245 = vand.u32 2147483647, %v1235
          %vm1246 = vcmp.eq.f32.partialorder %v1245, 8.507059e+37
          %v1247 = vand.u32 %v1235, 2147483648
          %v1248 = vor.u32 1.1754944e-38, %v1247
          %v1249 = vsel %vm1246, %v1248, %v1244
          %v1250 = vmul.f32 %v1225, %v1249
          %v1251 = vmin.f32 %v1250, 1.0
          %v1252 = vmax.f32 %v1251, -1.0
          %v1253 = vmul.f32 %v1077, %v1077
          %v1254 = vmin.f32 16.0, %v1253
          %v1255 = vmul.f32 %v1254, 2.1237322e-06
          %v1256 = vadd.f32 %v1255, 0.00028619796
          %v1257 = vmul.f32 %v1254, %v1256
          %v1258 = vadd.f32 %v1257, 0.0036580483
          %v1259 = vmul.f32 %v1254, %v1258
          %v1260 = vadd.f32 %v1259, 0.05243302
          %v1261 = vmul.f32 %v1254, %v1260
          %v1262 = vadd.f32 %v1261, 0.18741608
          %v1263 = vmul.f32 %v1254, %v1262
          %v1264 = vadd.f32 %v1263, 1.1283791
          %v1265 = vmul.f32 %v1077, %v1264
          %v1266 = vmul.f32 %v1254, 3.8918573e-05
          %v1267 = vadd.f32 %v1266, 0.001143296
          %v1268 = vmul.f32 %v1254, %v1267
          %v1269 = vadd.f32 %v1268, 0.014752088
          %v1270 = vmul.f32 %v1254, %v1269
          %v1271 = vadd.f32 %v1270, 0.112945676
          %v1272 = vmul.f32 %v1254, %v1271
          %v1273 = vadd.f32 %v1272, 0.4994258
          %v1274 = vmul.f32 %v1254, %v1273
          %v1275 = vadd.f32 %v1274, 1.0
          %v1276 = vrcp.pop %v1275
          %v1277 = vmul.f32 %v1275, %v1276
          %v1278 = vsub.f32 1.0, %v1277
          %v1279 = vmul.f32 %v1276, %v1278
          %v1280 = vadd.f32 %v1276, %v1279
          %vm1281 = vweird.f32 %v1275
          %vm1282 = vweird.f32 %v1276
          %vm1283 = vmor %vm1281, %vm1282
          %v1284 = vsel %vm1283, %v1276, %v1280
          %v1285 = vand.u32 2147483647, %v1275
          %vm1286 = vcmp.eq.f32.partialorder %v1285, 8.507059e+37
          %v1287 = vand.u32 %v1275, 2147483648
          %v1288 = vor.u32 1.1754944e-38, %v1287
          %v1289 = vsel %vm1286, %v1288, %v1284
          %v1290 = vmul.f32 %v1265, %v1289
          %v1291 = vmin.f32 %v1290, 1.0
          %v1292 = vmax.f32 %v1291, -1.0
          %v1293 = vmul.f32 %v1078, %v1078
          %v1294 = vmin.f32 16.0, %v1293
          %v1295 = vmul.f32 %v1294, 2.1237322e-06
          %v1296 = vadd.f32 %v1295, 0.00028619796
          %v1297 = vmul.f32 %v1294, %v1296
          %v1298 = vadd.f32 %v1297, 0.0036580483
          %v1299 = vmul.f32 %v1294, %v1298
          %v1300 = vadd.f32 %v1299, 0.05243302
          %v1301 = vmul.f32 %v1294, %v1300
          %v1302 = vadd.f32 %v1301, 0.18741608
          %v1303 = vmul.f32 %v1294, %v1302
          %v1304 = vadd.f32 %v1303, 1.1283791
          %v1305 = vmul.f32 %v1078, %v1304
          %v1306 = vmul.f32 %v1294, 3.8918573e-05
          %v1307 = vadd.f32 %v1306, 0.001143296
          %v1308 = vmul.f32 %v1294, %v1307
          %v1309 = vadd.f32 %v1308, 0.014752088
          %v1310 = vmul.f32 %v1294, %v1309
          %v1311 = vadd.f32 %v1310, 0.112945676
          %v1312 = vmul.f32 %v1294, %v1311
          %v1313 = vadd.f32 %v1312, 0.4994258
          %v1314 = vmul.f32 %v1294, %v1313
          %v1315 = vadd.f32 %v1314, 1.0
          %v1316 = vrcp.pop %v1315
          %v1317 = vmul.f32 %v1315, %v1316
          %v1318 = vsub.f32 1.0, %v1317
          %v1319 = vmul.f32 %v1316, %v1318
          %v1320 = vadd.f32 %v1316, %v1319
          %vm1321 = vweird.f32 %v1315
          %vm1322 = vweird.f32 %v1316
          %vm1323 = vmor %vm1321, %vm1322
          %v1324 = vsel %vm1323, %v1316, %v1320
          %v1325 = vand.u32 2147483647, %v1315
          %vm1326 = vcmp.eq.f32.partialorder %v1325, 8.507059e+37
          %v1327 = vand.u32 %v1315, 2147483648
          %v1328 = vor.u32 1.1754944e-38, %v1327
          %v1329 = vsel %vm1326, %v1328, %v1324
          %v1330 = vmul.f32 %v1305, %v1329
          %v1331 = vmin.f32 %v1330, 1.0
          %v1332 = vmax.f32 %v1331, -1.0
          %v1333 = vmul.f32 %v1079, %v1079
          %v1334 = vmin.f32 16.0, %v1333
          %v1335 = vmul.f32 %v1334, 2.1237322e-06
          %v1336 = vadd.f32 %v1335, 0.00028619796
          %v1337 = vmul.f32 %v1334, %v1336
          %v1338 = vadd.f32 %v1337, 0.0036580483
          %v1339 = vmul.f32 %v1334, %v1338
          %v1340 = vadd.f32 %v1339, 0.05243302
          %v1341 = vmul.f32 %v1334, %v1340
          %v1342 = vadd.f32 %v1341, 0.18741608
          %v1343 = vmul.f32 %v1334, %v1342
          %v1344 = vadd.f32 %v1343, 1.1283791
          %v1345 = vmul.f32 %v1079, %v1344
          %v1346 = vmul.f32 %v1334, 3.8918573e-05
          %v1347 = vadd.f32 %v1346, 0.001143296
          %v1348 = vmul.f32 %v1334, %v1347
          %v1349 = vadd.f32 %v1348, 0.014752088
          %v1350 = vmul.f32 %v1334, %v1349
          %v1351 = vadd.f32 %v1350, 0.112945676
          %v1352 = vmul.f32 %v1334, %v1351
          %v1353 = vadd.f32 %v1352, 0.4994258
          %v1354 = vmul.f32 %v1334, %v1353
          %v1355 = vadd.f32 %v1354, 1.0
          %v1356 = vrcp.pop %v1355
          %v1357 = vmul.f32 %v1355, %v1356
          %v1358 = vsub.f32 1.0, %v1357
          %v1359 = vmul.f32 %v1356, %v1358
          %v1360 = vadd.f32 %v1356, %v1359
          %vm1361 = vweird.f32 %v1355
          %vm1362 = vweird.f32 %v1356
          %vm1363 = vmor %vm1361, %vm1362
          %v1364 = vsel %vm1363, %v1356, %v1360
          %v1365 = vand.u32 2147483647, %v1355
          %vm1366 = vcmp.eq.f32.partialorder %v1365, 8.507059e+37
          %v1367 = vand.u32 %v1355, 2147483648
          %v1368 = vor.u32 1.1754944e-38, %v1367
          %v1369 = vsel %vm1366, %v1368, %v1364
          %v1370 = vmul.f32 %v1345, %v1369
          %v1371 = vmin.f32 %v1370, 1.0
          %v1372 = vmax.f32 %v1371, -1.0
          %v1373 = vmul.f32 %v1080, %v1080
          %v1374 = vmin.f32 16.0, %v1373
          %v1375 = vmul.f32 %v1374, 2.1237322e-06
          %v1376 = vadd.f32 %v1375, 0.00028619796
          %v1377 = vmul.f32 %v1374, %v1376
          %v1378 = vadd.f32 %v1377, 0.0036580483
          %v1379 = vmul.f32 %v1374, %v1378
          %v1380 = vadd.f32 %v1379, 0.05243302
          %v1381 = vmul.f32 %v1374, %v1380
          %v1382 = vadd.f32 %v1381, 0.18741608
          %v1383 = vmul.f32 %v1374, %v1382
          %v1384 = vadd.f32 %v1383, 1.1283791
          %v1385 = vmul.f32 %v1080, %v1384
          %v1386 = vmul.f32 %v1374, 3.8918573e-05
          %v1387 = vadd.f32 %v1386, 0.001143296
          %v1388 = vmul.f32 %v1374, %v1387
          %v1389 = vadd.f32 %v1388, 0.014752088
          %v1390 = vmul.f32 %v1374, %v1389
          %v1391 = vadd.f32 %v1390, 0.112945676
          %v1392 = vmul.f32 %v1374, %v1391
          %v1393 = vadd.f32 %v1392, 0.4994258
          %v1394 = vmul.f32 %v1374, %v1393
          %v1395 = vadd.f32 %v1394, 1.0
          %v1396 = vrcp.pop %v1395
          %v1397 = vmul.f32 %v1395, %v1396
          %v1398 = vsub.f32 1.0, %v1397
          %v1399 = vmul.f32 %v1396, %v1398
          %v1400 = vadd.f32 %v1396, %v1399
          %vm1401 = vweird.f32 %v1395
          %vm1402 = vweird.f32 %v1396
          %vm1403 = vmor %vm1401, %vm1402
          %v1404 = vsel %vm1403, %v1396, %v1400
          %v1405 = vand.u32 2147483647, %v1395
          %vm1406 = vcmp.eq.f32.partialorder %v1405, 8.507059e+37
          %v1407 = vand.u32 %v1395, 2147483648
          %v1408 = vor.u32 1.1754944e-38, %v1407
          %v1409 = vsel %vm1406, %v1408, %v1404
          %v1410 = vmul.f32 %v1385, %v1409
          %v1411 = vmin.f32 %v1410, 1.0
          %v1412 = vmax.f32 %v1411, -1.0
          %v1413 = vmul.f32 %v1081, %v1081
          %v1414 = vmin.f32 16.0, %v1413
          %v1415 = vmul.f32 %v1414, 2.1237322e-06
          %v1416 = vadd.f32 %v1415, 0.00028619796
          %v1417 = vmul.f32 %v1414, %v1416
          %v1418 = vadd.f32 %v1417, 0.0036580483
          %v1419 = vmul.f32 %v1414, %v1418
          %v1420 = vadd.f32 %v1419, 0.05243302
          %v1421 = vmul.f32 %v1414, %v1420
          %v1422 = vadd.f32 %v1421, 0.18741608
          %v1423 = vmul.f32 %v1414, %v1422
          %v1424 = vadd.f32 %v1423, 1.1283791
          %v1425 = vmul.f32 %v1081, %v1424
          %v1426 = vmul.f32 %v1414, 3.8918573e-05
          %v1427 = vadd.f32 %v1426, 0.001143296
          %v1428 = vmul.f32 %v1414, %v1427
          %v1429 = vadd.f32 %v1428, 0.014752088
          %v1430 = vmul.f32 %v1414, %v1429
          %v1431 = vadd.f32 %v1430, 0.112945676
          %v1432 = vmul.f32 %v1414, %v1431
          %v1433 = vadd.f32 %v1432, 0.4994258
          %v1434 = vmul.f32 %v1414, %v1433
          %v1435 = vadd.f32 %v1434, 1.0
          %v1436 = vrcp.pop %v1435
          %v1437 = vmul.f32 %v1435, %v1436
          %v1438 = vsub.f32 1.0, %v1437
          %v1439 = vmul.f32 %v1436, %v1438
          %v1440 = vadd.f32 %v1436, %v1439
          %vm1441 = vweird.f32 %v1435
          %vm1442 = vweird.f32 %v1436
          %vm1443 = vmor %vm1441, %vm1442
          %v1444 = vsel %vm1443, %v1436, %v1440
          %v1445 = vand.u32 2147483647, %v1435
          %vm1446 = vcmp.eq.f32.partialorder %v1445, 8.507059e+37
          %v1447 = vand.u32 %v1435, 2147483648
          %v1448 = vor.u32 1.1754944e-38, %v1447
          %v1449 = vsel %vm1446, %v1448, %v1444
          %v1450 = vmul.f32 %v1425, %v1449
          %v1451 = vmin.f32 %v1450, 1.0
          %v1452 = vmax.f32 %v1451, -1.0
          %v1453 = vmul.f32 %v1082, %v1082
          %v1454 = vmin.f32 16.0, %v1453
          %v1455 = vmul.f32 %v1454, 2.1237322e-06
          %v1456 = vadd.f32 %v1455, 0.00028619796
          %v1457 = vmul.f32 %v1454, %v1456
          %v1458 = vadd.f32 %v1457, 0.0036580483
          %v1459 = vmul.f32 %v1454, %v1458
          %v1460 = vadd.f32 %v1459, 0.05243302
          %v1461 = vmul.f32 %v1454, %v1460
          %v1462 = vadd.f32 %v1461, 0.18741608
          %v1463 = vmul.f32 %v1454, %v1462
          %v1464 = vadd.f32 %v1463, 1.1283791
          %v1465 = vmul.f32 %v1082, %v1464
          %v1466 = vmul.f32 %v1454, 3.8918573e-05
          %v1467 = vadd.f32 %v1466, 0.001143296
          %v1468 = vmul.f32 %v1454, %v1467
          %v1469 = vadd.f32 %v1468, 0.014752088
          %v1470 = vmul.f32 %v1454, %v1469
          %v1471 = vadd.f32 %v1470, 0.112945676
          %v1472 = vmul.f32 %v1454, %v1471
          %v1473 = vadd.f32 %v1472, 0.4994258
          %v1474 = vmul.f32 %v1454, %v1473
          %v1475 = vadd.f32 %v1474, 1.0
          %v1476 = vrcp.pop %v1475
          %v1477 = vmul.f32 %v1475, %v1476
          %v1478 = vsub.f32 1.0, %v1477
          %v1479 = vmul.f32 %v1476, %v1478
          %v1480 = vadd.f32 %v1476, %v1479
          %vm1481 = vweird.f32 %v1475
          %vm1482 = vweird.f32 %v1476
          %vm1483 = vmor %vm1481, %vm1482
          %v1484 = vsel %vm1483, %v1476, %v1480
          %v1485 = vand.u32 2147483647, %v1475
          %vm1486 = vcmp.eq.f32.partialorder %v1485, 8.507059e+37
          %v1487 = vand.u32 %v1475, 2147483648
          %v1488 = vor.u32 1.1754944e-38, %v1487
          %v1489 = vsel %vm1486, %v1488, %v1484
          %v1490 = vmul.f32 %v1465, %v1489
          %v1491 = vmin.f32 %v1490, 1.0
          %v1492 = vmax.f32 %v1491, -1.0
          %v1493 = vmul.f32 %v1083, %v1083
          %v1494 = vmin.f32 16.0, %v1493
          %v1495 = vmul.f32 %v1494, 2.1237322e-06
          %v1496 = vadd.f32 %v1495, 0.00028619796
          %v1497 = vmul.f32 %v1494, %v1496
          %v1498 = vadd.f32 %v1497, 0.0036580483
          %v1499 = vmul.f32 %v1494, %v1498
          %v1500 = vadd.f32 %v1499, 0.05243302
          %v1501 = vmul.f32 %v1494, %v1500
          %v1502 = vadd.f32 %v1501, 0.18741608
          %v1503 = vmul.f32 %v1494, %v1502
          %v1504 = vadd.f32 %v1503, 1.1283791
          %v1505 = vmul.f32 %v1083, %v1504
          %v1506 = vmul.f32 %v1494, 3.8918573e-05
          %v1507 = vadd.f32 %v1506, 0.001143296
          %v1508 = vmul.f32 %v1494, %v1507
          %v1509 = vadd.f32 %v1508, 0.014752088
          %v1510 = vmul.f32 %v1494, %v1509
          %v1511 = vadd.f32 %v1510, 0.112945676
          %v1512 = vmul.f32 %v1494, %v1511
          %v1513 = vadd.f32 %v1512, 0.4994258
          %v1514 = vmul.f32 %v1494, %v1513
          %v1515 = vadd.f32 %v1514, 1.0
          %v1516 = vrcp.pop %v1515
          %v1517 = vmul.f32 %v1515, %v1516
          %v1518 = vsub.f32 1.0, %v1517
          %v1519 = vmul.f32 %v1516, %v1518
          %v1520 = vadd.f32 %v1516, %v1519
          %vm1521 = vweird.f32 %v1515
          %vm1522 = vweird.f32 %v1516
          %vm1523 = vmor %vm1521, %vm1522
          %v1524 = vsel %vm1523, %v1516, %v1520
          %v1525 = vand.u32 2147483647, %v1515
          %vm1526 = vcmp.eq.f32.partialorder %v1525, 8.507059e+37
          %v1527 = vand.u32 %v1515, 2147483648
          %v1528 = vor.u32 1.1754944e-38, %v1527
          %v1529 = vsel %vm1526, %v1528, %v1524
          %v1530 = vmul.f32 %v1505, %v1529
          %v1531 = vmin.f32 %v1530, 1.0
          %v1532 = vmax.f32 %v1531, -1.0
          %v1533 = vmul.f32 %v1084, %v1084
          %v1534 = vmin.f32 16.0, %v1533
          %v1535 = vmul.f32 %v1534, 2.1237322e-06
          %v1536 = vadd.f32 %v1535, 0.00028619796
          %v1537 = vmul.f32 %v1534, %v1536
          %v1538 = vadd.f32 %v1537, 0.0036580483
          %v1539 = vmul.f32 %v1534, %v1538
          %v1540 = vadd.f32 %v1539, 0.05243302
          %v1541 = vmul.f32 %v1534, %v1540
          %v1542 = vadd.f32 %v1541, 0.18741608
          %v1543 = vmul.f32 %v1534, %v1542
          %v1544 = vadd.f32 %v1543, 1.1283791
          %v1545 = vmul.f32 %v1084, %v1544
          %v1546 = vmul.f32 %v1534, 3.8918573e-05
          %v1547 = vadd.f32 %v1546, 0.001143296
          %v1548 = vmul.f32 %v1534, %v1547
          %v1549 = vadd.f32 %v1548, 0.014752088
          %v1550 = vmul.f32 %v1534, %v1549
          %v1551 = vadd.f32 %v1550, 0.112945676
          %v1552 = vmul.f32 %v1534, %v1551
          %v1553 = vadd.f32 %v1552, 0.4994258
          %v1554 = vmul.f32 %v1534, %v1553
          %v1555 = vadd.f32 %v1554, 1.0
          %v1556 = vrcp.pop %v1555
          %v1557 = vmul.f32 %v1555, %v1556
          %v1558 = vsub.f32 1.0, %v1557
          %v1559 = vmul.f32 %v1556, %v1558
          %v1560 = vadd.f32 %v1556, %v1559
          %vm1561 = vweird.f32 %v1555
          %vm1562 = vweird.f32 %v1556
          %vm1563 = vmor %vm1561, %vm1562
          %v1564 = vsel %vm1563, %v1556, %v1560
          %v1565 = vand.u32 2147483647, %v1555
          %vm1566 = vcmp.eq.f32.partialorder %v1565, 8.507059e+37
          %v1567 = vand.u32 %v1555, 2147483648
          %v1568 = vor.u32 1.1754944e-38, %v1567
          %v1569 = vsel %vm1566, %v1568, %v1564
          %v1570 = vmul.f32 %v1545, %v1569
          %v1571 = vmin.f32 %v1570, 1.0
          %v1572 = vmax.f32 %v1571, -1.0
          %v1573 = vmul.f32 %v1085, %v1085
          %v1574 = vmin.f32 16.0, %v1573
          %v1575 = vmul.f32 %v1574, 2.1237322e-06
          %v1576 = vadd.f32 %v1575, 0.00028619796
          %v1577 = vmul.f32 %v1574, %v1576
          %v1578 = vadd.f32 %v1577, 0.0036580483
          %v1579 = vmul.f32 %v1574, %v1578
          %v1580 = vadd.f32 %v1579, 0.05243302
          %v1581 = vmul.f32 %v1574, %v1580
          %v1582 = vadd.f32 %v1581, 0.18741608
          %v1583 = vmul.f32 %v1574, %v1582
          %v1584 = vadd.f32 %v1583, 1.1283791
          %v1585 = vmul.f32 %v1085, %v1584
          %v1586 = vmul.f32 %v1574, 3.8918573e-05
          %v1587 = vadd.f32 %v1586, 0.001143296
          %v1588 = vmul.f32 %v1574, %v1587
          %v1589 = vadd.f32 %v1588, 0.014752088
          %v1590 = vmul.f32 %v1574, %v1589
          %v1591 = vadd.f32 %v1590, 0.112945676
          %v1592 = vmul.f32 %v1574, %v1591
          %v1593 = vadd.f32 %v1592, 0.4994258
          %v1594 = vmul.f32 %v1574, %v1593
          %v1595 = vadd.f32 %v1594, 1.0
          %v1596 = vrcp.pop %v1595
          %v1597 = vmul.f32 %v1595, %v1596
          %v1598 = vsub.f32 1.0, %v1597
          %v1599 = vmul.f32 %v1596, %v1598
          %v1600 = vadd.f32 %v1596, %v1599
          %vm1601 = vweird.f32 %v1595
          %vm1602 = vweird.f32 %v1596
          %vm1603 = vmor %vm1601, %vm1602
          %v1604 = vsel %vm1603, %v1596, %v1600
          %v1605 = vand.u32 2147483647, %v1595
          %vm1606 = vcmp.eq.f32.partialorder %v1605, 8.507059e+37
          %v1607 = vand.u32 %v1595, 2147483648
          %v1608 = vor.u32 1.1754944e-38, %v1607
          %v1609 = vsel %vm1606, %v1608, %v1604
          %v1610 = vmul.f32 %v1585, %v1609
          %v1611 = vmin.f32 %v1610, 1.0
          %v1612 = vmax.f32 %v1611, -1.0
          %v1613 = vmul.f32 %v1086, %v1086
          %v1614 = vmin.f32 16.0, %v1613
          %v1615 = vmul.f32 %v1614, 2.1237322e-06
          %v1616 = vadd.f32 %v1615, 0.00028619796
          %v1617 = vmul.f32 %v1614, %v1616
          %v1618 = vadd.f32 %v1617, 0.0036580483
          %v1619 = vmul.f32 %v1614, %v1618
          %v1620 = vadd.f32 %v1619, 0.05243302
          %v1621 = vmul.f32 %v1614, %v1620
          %v1622 = vadd.f32 %v1621, 0.18741608
          %v1623 = vmul.f32 %v1614, %v1622
          %v1624 = vadd.f32 %v1623, 1.1283791
          %v1625 = vmul.f32 %v1086, %v1624
          %v1626 = vmul.f32 %v1614, 3.8918573e-05
          %v1627 = vadd.f32 %v1626, 0.001143296
          %v1628 = vmul.f32 %v1614, %v1627
          %v1629 = vadd.f32 %v1628, 0.014752088
          %v1630 = vmul.f32 %v1614, %v1629
          %v1631 = vadd.f32 %v1630, 0.112945676
          %v1632 = vmul.f32 %v1614, %v1631
          %v1633 = vadd.f32 %v1632, 0.4994258
          %v1634 = vmul.f32 %v1614, %v1633
          %v1635 = vadd.f32 %v1634, 1.0
          %v1636 = vrcp.pop %v1635
          %v1637 = vmul.f32 %v1635, %v1636
          %v1638 = vsub.f32 1.0, %v1637
          %v1639 = vmul.f32 %v1636, %v1638
          %v1640 = vadd.f32 %v1636, %v1639
          %vm1641 = vweird.f32 %v1635
          %vm1642 = vweird.f32 %v1636
          %vm1643 = vmor %vm1641, %vm1642
          %v1644 = vsel %vm1643, %v1636, %v1640
          %v1645 = vand.u32 2147483647, %v1635
          %vm1646 = vcmp.eq.f32.partialorder %v1645, 8.507059e+37
          %v1647 = vand.u32 %v1635, 2147483648
          %v1648 = vor.u32 1.1754944e-38, %v1647
          %v1649 = vsel %vm1646, %v1648, %v1644
          %v1650 = vmul.f32 %v1625, %v1649
          %v1651 = vmin.f32 %v1650, 1.0
          %v1652 = vmax.f32 %v1651, -1.0
          %v1653 = vmul.f32 %v1087, %v1087
          %v1654 = vmin.f32 16.0, %v1653
          %v1655 = vmul.f32 %v1654, 2.1237322e-06
          %v1656 = vadd.f32 %v1655, 0.00028619796
          %v1657 = vmul.f32 %v1654, %v1656
          %v1658 = vadd.f32 %v1657, 0.0036580483
          %v1659 = vmul.f32 %v1654, %v1658
          %v1660 = vadd.f32 %v1659, 0.05243302
          %v1661 = vmul.f32 %v1654, %v1660
          %v1662 = vadd.f32 %v1661, 0.18741608
          %v1663 = vmul.f32 %v1654, %v1662
          %v1664 = vadd.f32 %v1663, 1.1283791
          %v1665 = vmul.f32 %v1087, %v1664
          %v1666 = vmul.f32 %v1654, 3.8918573e-05
          %v1667 = vadd.f32 %v1666, 0.001143296
          %v1668 = vmul.f32 %v1654, %v1667
          %v1669 = vadd.f32 %v1668, 0.014752088
          %v1670 = vmul.f32 %v1654, %v1669
          %v1671 = vadd.f32 %v1670, 0.112945676
          %v1672 = vmul.f32 %v1654, %v1671
          %v1673 = vadd.f32 %v1672, 0.4994258
          %v1674 = vmul.f32 %v1654, %v1673
          %v1675 = vadd.f32 %v1674, 1.0
          %v1676 = vrcp.pop %v1675
          %v1677 = vmul.f32 %v1675, %v1676
          %v1678 = vsub.f32 1.0, %v1677
          %v1679 = vmul.f32 %v1676, %v1678
          %v1680 = vadd.f32 %v1676, %v1679
          %vm1681 = vweird.f32 %v1675
          %vm1682 = vweird.f32 %v1676
          %vm1683 = vmor %vm1681, %vm1682
          %v1684 = vsel %vm1683, %v1676, %v1680
          %v1685 = vand.u32 2147483647, %v1675
          %vm1686 = vcmp.eq.f32.partialorder %v1685, 8.507059e+37
          %v1687 = vand.u32 %v1675, 2147483648
          %v1688 = vor.u32 1.1754944e-38, %v1687
          %v1689 = vsel %vm1686, %v1688, %v1684
          %v1690 = vmul.f32 %v1665, %v1689
          %v1691 = vmin.f32 %v1690, 1.0
          %v1692 = vmax.f32 %v1691, -1.0
          %v1693 = vmul.f32 %v1088, %v1088
          %v1694 = vmin.f32 16.0, %v1693
          %v1695 = vmul.f32 %v1694, 2.1237322e-06
          %v1696 = vadd.f32 %v1695, 0.00028619796
          %v1697 = vmul.f32 %v1694, %v1696
          %v1698 = vadd.f32 %v1697, 0.0036580483
          %v1699 = vmul.f32 %v1694, %v1698
          %v1700 = vadd.f32 %v1699, 0.05243302
          %v1701 = vmul.f32 %v1694, %v1700
          %v1702 = vadd.f32 %v1701, 0.18741608
          %v1703 = vmul.f32 %v1694, %v1702
          %v1704 = vadd.f32 %v1703, 1.1283791
          %v1705 = vmul.f32 %v1088, %v1704
          %v1706 = vmul.f32 %v1694, 3.8918573e-05
          %v1707 = vadd.f32 %v1706, 0.001143296
          %v1708 = vmul.f32 %v1694, %v1707
          %v1709 = vadd.f32 %v1708, 0.014752088
          %v1710 = vmul.f32 %v1694, %v1709
          %v1711 = vadd.f32 %v1710, 0.112945676
          %v1712 = vmul.f32 %v1694, %v1711
          %v1713 = vadd.f32 %v1712, 0.4994258
          %v1714 = vmul.f32 %v1694, %v1713
          %v1715 = vadd.f32 %v1714, 1.0
          %v1716 = vrcp.pop %v1715
          %v1717 = vmul.f32 %v1715, %v1716
          %v1718 = vsub.f32 1.0, %v1717
          %v1719 = vmul.f32 %v1716, %v1718
          %v1720 = vadd.f32 %v1716, %v1719
          %vm1721 = vweird.f32 %v1715
          %vm1722 = vweird.f32 %v1716
          %vm1723 = vmor %vm1721, %vm1722
          %v1724 = vsel %vm1723, %v1716, %v1720
          %v1725 = vand.u32 2147483647, %v1715
          %vm1726 = vcmp.eq.f32.partialorder %v1725, 8.507059e+37
          %v1727 = vand.u32 %v1715, 2147483648
          %v1728 = vor.u32 1.1754944e-38, %v1727
          %v1729 = vsel %vm1726, %v1728, %v1724
          %v1730 = vmul.f32 %v1705, %v1729
          %v1731 = vmin.f32 %v1730, 1.0
          %v1732 = vmax.f32 %v1731, -1.0
          %v1733 = vmul.f32 %v1089, %v1089
          %v1734 = vmin.f32 16.0, %v1733
          %v1735 = vmul.f32 %v1734, 2.1237322e-06
          %v1736 = vadd.f32 %v1735, 0.00028619796
          %v1737 = vmul.f32 %v1734, %v1736
          %v1738 = vadd.f32 %v1737, 0.0036580483
          %v1739 = vmul.f32 %v1734, %v1738
          %v1740 = vadd.f32 %v1739, 0.05243302
          %v1741 = vmul.f32 %v1734, %v1740
          %v1742 = vadd.f32 %v1741, 0.18741608
          %v1743 = vmul.f32 %v1734, %v1742
          %v1744 = vadd.f32 %v1743, 1.1283791
          %v1745 = vmul.f32 %v1089, %v1744
          %v1746 = vmul.f32 %v1734, 3.8918573e-05
          %v1747 = vadd.f32 %v1746, 0.001143296
          %v1748 = vmul.f32 %v1734, %v1747
          %v1749 = vadd.f32 %v1748, 0.014752088
          %v1750 = vmul.f32 %v1734, %v1749
          %v1751 = vadd.f32 %v1750, 0.112945676
          %v1752 = vmul.f32 %v1734, %v1751
          %v1753 = vadd.f32 %v1752, 0.4994258
          %v1754 = vmul.f32 %v1734, %v1753
          %v1755 = vadd.f32 %v1754, 1.0
          %v1756 = vrcp.pop %v1755
          %v1757 = vmul.f32 %v1755, %v1756
          %v1758 = vsub.f32 1.0, %v1757
          %v1759 = vmul.f32 %v1756, %v1758
          %v1760 = vadd.f32 %v1756, %v1759
          %vm1761 = vweird.f32 %v1755
          %vm1762 = vweird.f32 %v1756
          %vm1763 = vmor %vm1761, %vm1762
          %v1764 = vsel %vm1763, %v1756, %v1760
          %v1765 = vand.u32 2147483647, %v1755
          %vm1766 = vcmp.eq.f32.partialorder %v1765, 8.507059e+37
          %v1767 = vand.u32 %v1755, 2147483648
          %v1768 = vor.u32 1.1754944e-38, %v1767
          %v1769 = vsel %vm1766, %v1768, %v1764
          %v1770 = vmul.f32 %v1745, %v1769
          %v1771 = vmin.f32 %v1770, 1.0
          %v1772 = vmax.f32 %v1771, -1.0
          %v1773 = vmul.f32 %v1090, %v1090
          %v1774 = vmin.f32 16.0, %v1773
          %v1775 = vmul.f32 %v1774, 2.1237322e-06
          %v1776 = vadd.f32 %v1775, 0.00028619796
          %v1777 = vmul.f32 %v1774, %v1776
          %v1778 = vadd.f32 %v1777, 0.0036580483
          %v1779 = vmul.f32 %v1774, %v1778
          %v1780 = vadd.f32 %v1779, 0.05243302
          %v1781 = vmul.f32 %v1774, %v1780
          %v1782 = vadd.f32 %v1781, 0.18741608
          %v1783 = vmul.f32 %v1774, %v1782
          %v1784 = vadd.f32 %v1783, 1.1283791
          %v1785 = vmul.f32 %v1090, %v1784
          %v1786 = vmul.f32 %v1774, 3.8918573e-05
          %v1787 = vadd.f32 %v1786, 0.001143296
          %v1788 = vmul.f32 %v1774, %v1787
          %v1789 = vadd.f32 %v1788, 0.014752088
          %v1790 = vmul.f32 %v1774, %v1789
          %v1791 = vadd.f32 %v1790, 0.112945676
          %v1792 = vmul.f32 %v1774, %v1791
          %v1793 = vadd.f32 %v1792, 0.4994258
          %v1794 = vmul.f32 %v1774, %v1793
          %v1795 = vadd.f32 %v1794, 1.0
          %v1796 = vrcp.pop %v1795
          %v1797 = vmul.f32 %v1795, %v1796
          %v1798 = vsub.f32 1.0, %v1797
          %v1799 = vmul.f32 %v1796, %v1798
          %v1800 = vadd.f32 %v1796, %v1799
          %vm1801 = vweird.f32 %v1795
          %vm1802 = vweird.f32 %v1796
          %vm1803 = vmor %vm1801, %vm1802
          %v1804 = vsel %vm1803, %v1796, %v1800
          %v1805 = vand.u32 2147483647, %v1795
          %vm1806 = vcmp.eq.f32.partialorder %v1805, 8.507059e+37
          %v1807 = vand.u32 %v1795, 2147483648
          %v1808 = vor.u32 1.1754944e-38, %v1807
          %v1809 = vsel %vm1806, %v1808, %v1804
          %v1810 = vmul.f32 %v1785, %v1809
          %v1811 = vmin.f32 %v1810, 1.0
          %v1812 = vmax.f32 %v1811, -1.0
          %v1813 = vmul.f32 %v1091, %v1091
          %v1814 = vmin.f32 16.0, %v1813
          %v1815 = vmul.f32 %v1814, 2.1237322e-06
          %v1816 = vadd.f32 %v1815, 0.00028619796
          %v1817 = vmul.f32 %v1814, %v1816
          %v1818 = vadd.f32 %v1817, 0.0036580483
          %v1819 = vmul.f32 %v1814, %v1818
          %v1820 = vadd.f32 %v1819, 0.05243302
          %v1821 = vmul.f32 %v1814, %v1820
          %v1822 = vadd.f32 %v1821, 0.18741608
          %v1823 = vmul.f32 %v1814, %v1822
          %v1824 = vadd.f32 %v1823, 1.1283791
          %v1825 = vmul.f32 %v1091, %v1824
          %v1826 = vmul.f32 %v1814, 3.8918573e-05
          %v1827 = vadd.f32 %v1826, 0.001143296
          %v1828 = vmul.f32 %v1814, %v1827
          %v1829 = vadd.f32 %v1828, 0.014752088
          %v1830 = vmul.f32 %v1814, %v1829
          %v1831 = vadd.f32 %v1830, 0.112945676
          %v1832 = vmul.f32 %v1814, %v1831
          %v1833 = vadd.f32 %v1832, 0.4994258
          %v1834 = vmul.f32 %v1814, %v1833
          %v1835 = vadd.f32 %v1834, 1.0
          %v1836 = vrcp.pop %v1835
          %v1837 = vmul.f32 %v1835, %v1836
          %v1838 = vsub.f32 1.0, %v1837
          %v1839 = vmul.f32 %v1836, %v1838
          %v1840 = vadd.f32 %v1836, %v1839
          %vm1841 = vweird.f32 %v1835
          %vm1842 = vweird.f32 %v1836
          %vm1843 = vmor %vm1841, %vm1842
          %v1844 = vsel %vm1843, %v1836, %v1840
          %v1845 = vand.u32 2147483647, %v1835
          %vm1846 = vcmp.eq.f32.partialorder %v1845, 8.507059e+37
          %v1847 = vand.u32 %v1835, 2147483648
          %v1848 = vor.u32 1.1754944e-38, %v1847
          %v1849 = vsel %vm1846, %v1848, %v1844
          %v1850 = vmul.f32 %v1825, %v1849
          %v1851 = vmin.f32 %v1850, 1.0
          %v1852 = vmax.f32 %v1851, -1.0
          %v1853 = vmul.f32 %v1092, %v1092
          %v1854 = vmin.f32 16.0, %v1853
          %v1855 = vmul.f32 %v1854, 2.1237322e-06
          %v1856 = vadd.f32 %v1855, 0.00028619796
          %v1857 = vmul.f32 %v1854, %v1856
          %v1858 = vadd.f32 %v1857, 0.0036580483
          %v1859 = vmul.f32 %v1854, %v1858
          %v1860 = vadd.f32 %v1859, 0.05243302
          %v1861 = vmul.f32 %v1854, %v1860
          %v1862 = vadd.f32 %v1861, 0.18741608
          %v1863 = vmul.f32 %v1854, %v1862
          %v1864 = vadd.f32 %v1863, 1.1283791
          %v1865 = vmul.f32 %v1092, %v1864
          %v1866 = vmul.f32 %v1854, 3.8918573e-05
          %v1867 = vadd.f32 %v1866, 0.001143296
          %v1868 = vmul.f32 %v1854, %v1867
          %v1869 = vadd.f32 %v1868, 0.014752088
          %v1870 = vmul.f32 %v1854, %v1869
          %v1871 = vadd.f32 %v1870, 0.112945676
          %v1872 = vmul.f32 %v1854, %v1871
          %v1873 = vadd.f32 %v1872, 0.4994258
          %v1874 = vmul.f32 %v1854, %v1873
          %v1875 = vadd.f32 %v1874, 1.0
          %v1876 = vrcp.pop %v1875
          %v1877 = vmul.f32 %v1875, %v1876
          %v1878 = vsub.f32 1.0, %v1877
          %v1879 = vmul.f32 %v1876, %v1878
          %v1880 = vadd.f32 %v1876, %v1879
          %vm1881 = vweird.f32 %v1875
          %vm1882 = vweird.f32 %v1876
          %vm1883 = vmor %vm1881, %vm1882
          %v1884 = vsel %vm1883, %v1876, %v1880
          %v1885 = vand.u32 2147483647, %v1875
          %vm1886 = vcmp.eq.f32.partialorder %v1885, 8.507059e+37
          %v1887 = vand.u32 %v1875, 2147483648
          %v1888 = vor.u32 1.1754944e-38, %v1887
          %v1889 = vsel %vm1886, %v1888, %v1884
          %v1890 = vmul.f32 %v1865, %v1889
          %v1891 = vmin.f32 %v1890, 1.0
          %v1892 = vmax.f32 %v1891, -1.0
          %v1893 = vadd.f32 %v1132, 1.0
          %v1894 = vadd.f32 %v1172, 1.0
          %v1895 = vadd.f32 %v1212, 1.0
          %v1896 = vadd.f32 %v1252, 1.0
          %v1897 = vadd.f32 %v1292, 1.0
          %v1898 = vadd.f32 %v1332, 1.0
          %v1899 = vadd.f32 %v1372, 1.0
          %v1900 = vadd.f32 %v1412, 1.0
          %v1901 = vadd.f32 %v1452, 1.0
          %v1902 = vadd.f32 %v1492, 1.0
          %v1903 = vadd.f32 %v1532, 1.0
          %v1904 = vadd.f32 %v1572, 1.0
          %v1905 = vadd.f32 %v1612, 1.0
          %v1906 = vadd.f32 %v1652, 1.0
          %v1907 = vadd.f32 %v1692, 1.0
          %v1908 = vadd.f32 %v1732, 1.0
          %v1909 = vadd.f32 %v1772, 1.0
          %v1910 = vadd.f32 %v1812, 1.0
          %v1911 = vadd.f32 %v1852, 1.0
          %v1912 = vadd.f32 %v1892, 1.0
          %v1913 = vmul.f32 %v1053, %v1893
          %v1914 = vmul.f32 %v1054, %v1894
          %v1915 = vmul.f32 %v1055, %v1895
          %v1916 = vmul.f32 %v1056, %v1896
          %v1917 = vmul.f32 %v1057, %v1897
          %v1918 = vmul.f32 %v1058, %v1898
          %v1919 = vmul.f32 %v1059, %v1899
          %v1920 = vmul.f32 %v1060, %v1900
          %v1921 = vmul.f32 %v1061, %v1901
          %v1922 = vmul.f32 %v1062, %v1902
          %v1923 = vmul.f32 %v1063, %v1903
          %v1924 = vmul.f32 %v1064, %v1904
          %v1925 = vmul.f32 %v1065, %v1905
          %v1926 = vmul.f32 %v1066, %v1906
          %v1927 = vmul.f32 %v1067, %v1907
          %v1928 = vmul.f32 %v1068, %v1908
          %v1929 = vmul.f32 %v1069, %v1909
          %v1930 = vmul.f32 %v1070, %v1910
          %v1931 = vmul.f32 %v1071, %v1911
          %v1932 = vmul.f32 %v1072, %v1912
          %v1933 = vpack.c.bf16 %v1914, %v1913
          %v1934 = vpack.c.bf16 %v1916, %v1915
          %v1935 = vpack.c.bf16 %v1918, %v1917
          %v1936 = vpack.c.bf16 %v1920, %v1919
          %v1937 = vpack.c.bf16 %v1922, %v1921
          %v1938 = vpack.c.bf16 %v1924, %v1923
          %v1939 = vpack.c.bf16 %v1926, %v1925
          %v1940 = vpack.c.bf16 %v1928, %v1927
          %v1941 = vpack.c.bf16 %v1930, %v1929
          %v1942 = vpack.c.bf16 %v1932, %v1931
          %1943 = vst [vmem:[%s274] sm:$0xff] %v1933
          %1944 = vst [vmem:[%s274 + $0x8] sm:$0xff] %v1934
          %1945 = vst [vmem:[%s274 + $0x10] sm:$0xff] %v1935
          %1946 = vst [vmem:[%s274 + $0x18] sm:$0xff] %v1936
          %1947 = vst [vmem:[%s274 + $0x20] sm:$0xff] %v1937
          %1948 = vst [vmem:[%s274 + $0x28] sm:$0xff] %v1938
          %1949 = vst [vmem:[%s274 + $0x30] sm:$0xff] %v1939
          %1950 = vst [vmem:[%s274 + $0x38] sm:$0xff] %v1940
          %1951 = vst [vmem:[%s274 + $0x40] sm:$0xff] %v1941
          %1952 = vst [vmem:[%s274 + $0x48] sm:$0xff] %v1942
        $region56: #{tpu_custom_call.1} parent=35 // pred_fallthru
          _
        %s1953 = sand.u32 %s138, 1
        %s1954 = scalar_lea.sflag [#allocation5], %s1953
        %s1955 = sand.u32 %s138, 1
        %s1956 = smul.addr %s1955, 80
        %s1957 = scalar_lea.vmem [#allocation9], %s1956
        // Predicated region
        $region57: #{tpu_custom_call.1} parent=35 // pred_check
          %p1958 = pneg %p148
        $region58: #{tpu_custom_call.1} parent=35 // pred_check_branch
          %1960 = sbr.rel (%p1958) target = $region60
        $region59: #{tpu_custom_call.1} parent=35 // pred_region
          %s1961 = smul.u32 10, %s26
          %1963 = vsyncadd %s1954, 0
          %s1964 = smul.addr %s1961, 2
          %s1965 = smul.addr %s1964, 4
          %s1966 = scalar_lea.hbm %s4, %s1965
          %s1967 = sshll.u32 %s1957, 4
          %s1968 = int_to_ptr.vmem [resolvable:$true] %s1967
          %s1969 = sshll.u32 %s1966, 4
          %s1970 = int_to_ptr.hbm [resolvable:$true] %s1969
          %1975 = dma.vmem_to_hbm [thread:$0]  %s1968, 1280, %s1970, %s1954, 128, 128, 8
        $region60: #{tpu_custom_call.1} parent=35 // pred_fallthru
          _
      $region36: #{tpu_custom_call.1} parent=5 // pred_fallthru
        _
      %p1976 = scmp.le.s32.totalorder 2, %s17
      // Predicated region
      $region61: #{tpu_custom_call.1} parent=5 // pred_check
        %p1977 = pneg %p1976
      $region62: #{tpu_custom_call.1} parent=5 // pred_check_branch
        %1979 = sbr.rel (%p1977) target = $region64
      $region63: #{tpu_custom_call.1} parent=5 // pred_region
        %s1980 = ssub.s32 %s17, 2
        // Predicated region
        $region65: #{tpu_custom_call.1} parent=63 // pred_check
          %p1981 = pneg %p154
        $region66: #{tpu_custom_call.1} parent=63 // pred_check_branch
          %1983 = sbr.rel (%p1981) target = $region68
        $region67: #{tpu_custom_call.1} parent=63 // pred_region
          %s1984 = sand.u32 %s139, 1
          %s1985 = scalar_lea.sflag [#allocation5], %s1984
          %s1986 = sand.u32 %s139, 1
          %s1987 = smul.addr %s1986, 80
          %s1988 = scalar_lea.vmem [#allocation9], %s1987
          %1990 = dma.done %s1985, 1280
        $region68: #{tpu_custom_call.1} parent=63 // pred_fallthru
          _
      $region64: #{tpu_custom_call.1} parent=5 // pred_fallthru
        _
    $region6: #{tpu_custom_call.1} parent=1 // loop_footer
      %s21 = sadd.s32 1, %s17
    $region7: #{tpu_custom_call.1} parent=1 // loop_footer_branch
      %16 = sbr.rel target = $region3
    $region8: #{tpu_custom_call.1} parent=1 // loop_exit
      _
    %1991 = vsyncpa [#allocation4], 1
    %s1992 = scalar_lea.sflag [#allocation4], 1
    %1993 = vsyncpa %s1992, 1
    %1994 = vsyncpa [#allocation7], 1
    %1995 = vsyncpa [#allocation5], 1
    %s1996 = scalar_lea.sflag [#allocation5], 1
    %1997 = vsyncpa %s1996, 1

</llo_original>
